<compile_context>
chip_gen: v7x
topology: tpu7x:2x2x1
jax: 0.10.0
libtpu: 0.0.40
codegen_flags: <defaults>
</compile_context>

<pallas_src>
import functools

import jax
import jax.numpy as jnp
from jax.experimental import pallas as pl
from jax.experimental.pallas import tpu as pltpu


def _attention_kernel(xf_ref, xq_ref, bias_ref, mask_ref,
                      gamma_ref, beta_ref,
                      w_qg_ref, b_g_ref, w_kv_ref, w_o_ref, b_o_ref,
                      out_ref, y_acc,
                      *, num_heads, head_width, ln_eps):
    D = num_heads * head_width
    gamma = gamma_ref[...]
    beta = beta_ref[...]

    def layer_norm(x):
        x = x.astype(jnp.float32)
        mean = jnp.mean(x, axis=-1, keepdims=True)
        xc = x - mean
        var = jnp.mean(xc * xc, axis=-1, keepdims=True)
        return (xc * jax.lax.rsqrt(var + ln_eps)) * gamma + beta

    # ---- K / V over all key rows (bf16 operands to the MXU, f32 accum) ----
    xf_ln = layer_norm(xf_ref[0])                                    # (N, D) f32
    kv = jnp.dot(xf_ln.astype(jnp.bfloat16), w_kv_ref[...],
                 preferred_element_type=jnp.float32)                 # (N, 2D) f32
    k_all = kv[:, :D].astype(jnp.bfloat16)
    v_all = kv[:, D:].astype(jnp.bfloat16)

    # ---- Q / gate over the query tile (hw^-0.5 pre-folded into W_q) ----
    xq_ln = layer_norm(xq_ref[0])                                    # (tq, D) f32
    qg = jnp.dot(xq_ln.astype(jnp.bfloat16), w_qg_ref[...],
                 preferred_element_type=jnp.float32)                 # (tq, 2D) f32
    q_all = qg[:, :D].astype(jnp.bfloat16)
    gate = jax.nn.sigmoid(qg[:, D:] + b_g_ref[...])                  # (tq, D) f32

    # ---- bias + additive key mask, computed ONCE for all heads (f32) ----
    mask_row = mask_ref[0]                                           # (1, N)
    mask_add = jnp.where(mask_row == 0.0,
                         jnp.float32(-1e30), jnp.float32(0.0))       # (1, N)
    bias_m = bias_ref[0].astype(jnp.float32) + mask_add[None, :, :]  # (H, tq, N)

    # ---- attention core, per head (static unroll; hw, H are small) ----
    for h in range(num_heads):
        lo = h * head_width
        hi = lo + head_width
        q_h = q_all[:, lo:hi]                                        # (tq, hw) bf16
        k_h = k_all[:, lo:hi]                                        # (N,  hw) bf16
        v_h = v_all[:, lo:hi]                                        # (N,  hw) bf16
        # q_h @ k_h^T without an explicit transpose (contract last dims).
        s = jax.lax.dot_general(q_h, k_h, (((1,), (1,)), ((), ())),
                                preferred_element_type=jnp.float32)  # (tq, N) f32
        s = s + bias_m[h]
        m = jnp.max(s, axis=-1, keepdims=True)
        e = jnp.exp(s - m)                                           # f32 (EUP)
        denom = jnp.sum(e, axis=-1, keepdims=True)
        # Deferred normalization: un-normalized e @ v, then approx reciprocal.
        y_h = jnp.dot(e.astype(jnp.bfloat16), v_h,
                      preferred_element_type=jnp.float32)            # (tq, hw)
        y_acc[:, lo:hi] = y_h * pl.reciprocal(denom, approx=True)

    y = gate * y_acc[...]                                            # (tq, D) f32
    out = jnp.dot(y.astype(jnp.bfloat16), w_o_ref[...],
                  preferred_element_type=jnp.float32) + b_o_ref[...]
    out_ref[0] = out.astype(out_ref.dtype)


def prepare_params(raw, *, num_heads, head_width):
    """One-time parameter prep: fuse projections, fold scale, cast to bf16."""
    f32 = jnp.float32
    scale = f32(head_width ** (-0.5))
    return {
        "gamma": raw["gamma"].astype(f32),
        "beta": raw["beta"].astype(f32),
        "w_qg": jnp.concatenate([raw["w_q"].astype(f32) * scale,
                                 raw["w_g"].astype(f32)],
                                axis=1).astype(jnp.bfloat16),
        "b_g": raw["b_g"].astype(f32),
        "w_kv": jnp.concatenate([raw["w_k"].astype(f32),
                                 raw["w_v"].astype(f32)],
                                axis=1).astype(jnp.bfloat16),
        "w_o": raw["w_o"].astype(jnp.bfloat16),
        "b_o": raw["b_o"].astype(f32),
    }


def attention_forward(x, bias, mask, prep, *, num_heads, head_width,
                      ln_eps=1e-5, q_tile=None, out_dtype=None):
    """x: (B, N, D), bias: (B, H, N, N) (any float dtype, bf16 preferred),
    mask: (B, N) -> (B, N, D). Requires >=1 unmasked key per query row."""
    B, N, D = x.shape
    H = num_heads
    assert D == num_heads * head_width
    out_dtype = x.dtype if out_dtype is None else out_dtype

    if q_tile is None:
        q_tile = N if N <= 128 else 128
    if N % q_tile != 0:
        q_tile = N  # TODO(synk): pad / ragged q-tiles for N not multiple of 128
    num_q = N // q_tile

    mask3 = mask.reshape(B, 1, N).astype(jnp.float32)

    kernel = functools.partial(_attention_kernel, num_heads=H,
                               head_width=head_width, ln_eps=ln_eps)

    # Rough per-step VMEM footprint (double-buffered blocks + scratch).
    blk_bytes = (
        N * D * x.dtype.itemsize                 # x (full, for K/V)
        + q_tile * D * x.dtype.itemsize          # x (query tile)
        + q_tile * D * jnp.dtype(out_dtype).itemsize
        + H * q_tile * N * bias.dtype.itemsize   # bias tile
        + N * 4                                  # mask
        + 2 * (D * 2 * D) * 2                    # w_qg, w_kv (bf16)
        + D * D * 2                              # w_o (bf16)
        + 4 * D * 4)                             # gamma/beta/b_g/b_o
    vmem_limit = int(min(max(8 * blk_bytes + (4 << 20), 16 << 20), 64 << 20))

    flops = B * (num_q * 2 * N * D * (2 * D)     # K/V proj (per query tile)
                 + 2 * N * D * (2 * D)           # Q/gate proj
                 + 2 * N * N * D                 # scores
                 + 2 * N * N * D                 # e @ v
                 + 2 * N * D * D)                # output proj
    transc = B * (H * N * N + 2 * N * D + num_q * N + N)
    bytes_accessed = int(
        (1 + num_q) * N * D * x.dtype.itemsize * B
        + bias.size * bias.dtype.itemsize
        + mask3.size * 4
        + (prep["w_qg"].size + prep["w_kv"].size + prep["w_o"].size) * 2
        + (prep["gamma"].size + prep["beta"].size
           + prep["b_g"].size + prep["b_o"].size) * 4
        + B * N * D * jnp.dtype(out_dtype).itemsize)

    out = pl.pallas_call(
        kernel,
        out_shape=jax.ShapeDtypeStruct((B, N, D), out_dtype),
        grid_spec=pltpu.PrefetchScalarGridSpec(
            num_scalar_prefetch=0,
            grid=(B, num_q),
            in_specs=[
                pl.BlockSpec((1, N, D), lambda b, q: (b, 0, 0)),          # x (full)
                pl.BlockSpec((1, q_tile, D), lambda b, q: (b, q, 0)),     # x (q tile)
                pl.BlockSpec((1, H, q_tile, N), lambda b, q: (b, 0, q, 0)),  # bias
                pl.BlockSpec((1, 1, N), lambda b, q: (b, 0, 0)),          # mask
                pl.BlockSpec((1, D), lambda b, q: (0, 0)),                # gamma
                pl.BlockSpec((1, D), lambda b, q: (0, 0)),                # beta
                pl.BlockSpec((D, 2 * D), lambda b, q: (0, 0)),            # w_qg (bf16)
                pl.BlockSpec((1, D), lambda b, q: (0, 0)),                # b_g
                pl.BlockSpec((D, 2 * D), lambda b, q: (0, 0)),            # w_kv (bf16)
                pl.BlockSpec((D, D), lambda b, q: (0, 0)),                # w_o (bf16)
                pl.BlockSpec((1, D), lambda b, q: (0, 0)),                # b_o
            ],
            out_specs=pl.BlockSpec((1, q_tile, D), lambda b, q: (b, q, 0)),
            scratch_shapes=[pltpu.VMEM((q_tile, D), jnp.float32)],
        ),
        compiler_params=pltpu.CompilerParams(
            dimension_semantics=("parallel", "parallel"),
            vmem_limit_bytes=vmem_limit),
        cost_estimate=pl.CostEstimate(
            flops=flops, transcendentals=transc,
            bytes_accessed=bytes_accessed),
    )(x, x, bias, mask3,
      prep["gamma"], prep["beta"],
      prep["w_qg"], prep["b_g"], prep["w_kv"],
      prep["w_o"], prep["b_o"])
    return out


def _reference(x, bias, mask, p, *, num_heads, head_width, ln_eps=1e-5):
    """Pure-JAX f32 reference matching the torch forward exactly."""
    B, N, D = x.shape
    hp = jax.lax.Precision.HIGHEST
    mean = jnp.mean(x, axis=-1, keepdims=True)
    xc = x - mean
    var = jnp.mean(xc * xc, axis=-1, keepdims=True)
    x_ln = xc * jax.lax.rsqrt(var + ln_eps) * p["gamma"] + p["beta"]

    def heads(w):
        t = jnp.einsum('bnd,de->bne', x_ln, w, precision=hp)
        return t.reshape(B, N, num_heads, head_width).transpose(0, 2, 1, 3)

    q = heads(p["w_q"]) * (head_width ** (-0.5))
    k = heads(p["w_k"])
    v = heads(p["w_v"])
    s = jnp.einsum('bhqc,bhkc->bhqk', q, k, precision=hp) + bias
    s = jnp.where(mask[:, None, None, :] == 0, -jnp.inf, s)
    a = jax.nn.softmax(s, axis=-1)
    y = jnp.einsum('bhqk,bhkc->bqhc', a, v, precision=hp).reshape(B, N, D)
    g = jax.nn.sigmoid(
        jnp.einsum('bnd,de->bne', x_ln, p["w_g"], precision=hp) + p["b_g"])
    y = g * y
    return jnp.einsum('bnd,de->bne', y, p["w_o"], precision=hp) + p["b_o"]


def _init_params(key, dim, num_heads):
    # Shapes follow the torch module; weights stored (in, out) = torch W.T.
    # torch zero-inits g_proj.weight / o_proj.bias and ones g_proj.bias; we use
    # small randoms so the gating and bias paths are actually exercised.
    ks = jax.random.split(key, 9)
    f32 = jnp.float32
    s = 1.0 / (dim ** 0.5)
    return {
        "gamma": 1.0 + 0.1 * jax.random.normal(ks[0], (1, dim), f32),
        "beta":  0.1 * jax.random.normal(ks[1], (1, dim), f32),
        "w_q":   s * jax.random.normal(ks[2], (dim, dim), f32),
        "w_k":   s * jax.random.normal(ks[3], (dim, dim), f32),
        "w_v":   s * jax.random.normal(ks[4], (dim, dim), f32),
        "w_g":   0.1 * s * jax.random.normal(ks[5], (dim, dim), f32),
        "b_g":   1.0 + 0.1 * jax.random.normal(ks[6], (1, dim), f32),
        "w_o":   s * jax.random.normal(ks[7], (dim, dim), f32),
        "b_o":   0.01 * jax.random.normal(ks[8], (1, dim), f32),
    }


if __name__ == "__main__":
    num_heads = 4
    head_width = 8
    dim = num_heads * head_width          # 32
    batch, seq = 2, 8

    key = jax.random.PRNGKey(0)
    k_x, k_b, k_p = jax.random.split(key, 3)

    x = jax.random.normal(k_x, (batch, seq, dim), jnp.float32)
    # Model-dtype (bf16) bias in HBM; kernel upcasts after load.
    bias = (0.5 * jax.random.normal(k_b, (batch, num_heads, seq, seq),
                                    jnp.float32)).astype(jnp.bfloat16)
    mask = jnp.ones((batch, seq), jnp.float32)
    mask = mask.at[1, -3:].set(0.0)       # some masked keys, >=1 valid per row

    raw_params = _init_params(k_p, dim, num_heads)
    prep = prepare_params(raw_params, num_heads=num_heads,
                          head_width=head_width)

    out = attention_forward(x, bias, mask, prep,
                            num_heads=num_heads, head_width=head_width)
    jax.block_until_ready(out)

    ref = _reference(x, bias.astype(jnp.float32), mask, raw_params,
                     num_heads=num_heads, head_width=head_width)

    assert out.shape == (batch, seq, dim)
    max_err = float(jnp.max(jnp.abs(out - ref)))
    # bf16 MXU operands + approx reciprocal vs f32 reference -> loosened tol.
    assert jnp.allclose(out, ref, atol=5e-2, rtol=5e-2), (
        "mismatch, max abs err = %e" % max_err)

    print("KERNEL_OK")
</pallas_src>

<mosaic_0001>
module attributes {stable_mosaic.version = 11 : i64} {
  func.func @_attention_kernel(%arg0: i32, %arg1: i32, %arg2: memref<1x8x32xf32, #tpu.memory_space<vmem>>, %arg3: memref<1x8x32xf32, #tpu.memory_space<vmem>>, %arg4: memref<1x4x8x8xbf16, #tpu.memory_space<vmem>>, %arg5: memref<1x1x8xf32, #tpu.memory_space<vmem>>, %arg6: memref<1x32xf32, #tpu.memory_space<vmem>>, %arg7: memref<1x32xf32, #tpu.memory_space<vmem>>, %arg8: memref<32x64xbf16, #tpu.memory_space<vmem>>, %arg9: memref<1x32xf32, #tpu.memory_space<vmem>>, %arg10: memref<32x64xbf16, #tpu.memory_space<vmem>>, %arg11: memref<32x32xbf16, #tpu.memory_space<vmem>>, %arg12: memref<1x32xf32, #tpu.memory_space<vmem>>, %arg13: memref<1x8x32xf32, #tpu.memory_space<vmem>>, %arg14: memref<8x32xf32, #tpu.memory_space<vmem>>) attributes {dimension_semantics = [#tpu.dimension_semantics<parallel>, #tpu.dimension_semantics<parallel>], iteration_bounds = array<i64: 2, 1>, scalar_prefetch = 0 : i64, scratch_operands = 1 : i64, tpu.core_type = #tpu.core_type<tc>, window_params = [{transform_indices = @transform_0, window_bounds = array<i64: 1, 8, 32>}, {transform_indices = @transform_1, window_bounds = array<i64: 1, 8, 32>}, {transform_indices = @transform_2, window_bounds = array<i64: 1, 4, 8, 8>}, {transform_indices = @transform_3, window_bounds = array<i64: 1, 1, 8>}, {pipeline_mode = #tpu.pipeline_mode<synchronous>, transform_indices = @transform_4, window_bounds = array<i64: 1, 32>}, {pipeline_mode = #tpu.pipeline_mode<synchronous>, transform_indices = @transform_5, window_bounds = array<i64: 1, 32>}, {pipeline_mode = #tpu.pipeline_mode<synchronous>, transform_indices = @transform_6, window_bounds = array<i64: 32, 64>}, {pipeline_mode = #tpu.pipeline_mode<synchronous>, transform_indices = @transform_7, window_bounds = array<i64: 1, 32>}, {pipeline_mode = #tpu.pipeline_mode<synchronous>, transform_indices = @transform_8, window_bounds = array<i64: 32, 64>}, {pipeline_mode = #tpu.pipeline_mode<synchronous>, transform_indices = @transform_9, window_bounds = array<i64: 32, 32>}, {pipeline_mode = #tpu.pipeline_mode<synchronous>, transform_indices = @transform_10, window_bounds = array<i64: 1, 32>}, {transform_indices = @transform_11, window_bounds = array<i64: 1, 8, 32>}]} {
    %c0 = arith.constant 0 : index
    %c0_0 = arith.constant 0 : index
    %0 = vector.load %arg6[%c0, %c0_0] : memref<1x32xf32, #tpu.memory_space<vmem>>, vector<1x32xf32>
    %c0_1 = arith.constant 0 : index
    %c0_2 = arith.constant 0 : index
    %1 = vector.load %arg7[%c0_1, %c0_2] : memref<1x32xf32, #tpu.memory_space<vmem>>, vector<1x32xf32>
    %c0_3 = arith.constant 0 : index
    %c0_4 = arith.constant 0 : index
    %c0_5 = arith.constant 0 : index
    %2 = vector.load %arg2[%c0_3, %c0_4, %c0_5] : memref<1x8x32xf32, #tpu.memory_space<vmem>>, vector<1x8x32xf32>
    %3 = vector.shape_cast %2 : vector<1x8x32xf32> to vector<8x32xf32>
    %cst = arith.constant dense<0.000000e+00> : vector<8xf32>
    %4 = vector.multi_reduction <add>, %3, %cst [1] : vector<8x32xf32> to vector<8xf32>
    %5 = vector.shape_cast %4 : vector<8xf32> to vector<8x1xf32>
    %cst_6 = arith.constant 3.200000e+01 : f32
    %6 = vector.broadcast %cst_6 : f32 to vector<8x1xf32>
    %7 = arith.divf %5, %6 : vector<8x1xf32>
    %8 = vector.broadcast %7 : vector<8x1xf32> to vector<8x32xf32>
    %9 = arith.subf %3, %8 : vector<8x32xf32>
    %10 = arith.mulf %9, %9 : vector<8x32xf32>
    %cst_7 = arith.constant dense<0.000000e+00> : vector<8xf32>
    %11 = vector.multi_reduction <add>, %10, %cst_7 [1] : vector<8x32xf32> to vector<8xf32>
    %12 = vector.shape_cast %11 : vector<8xf32> to vector<8x1xf32>
    %cst_8 = arith.constant 3.200000e+01 : f32
    %13 = vector.broadcast %cst_8 : f32 to vector<8x1xf32>
    %14 = arith.divf %12, %13 : vector<8x1xf32>
    %cst_9 = arith.constant 9.99999974E-6 : f32
    %15 = vector.broadcast %cst_9 : f32 to vector<8x1xf32>
    %16 = arith.addf %14, %15 : vector<8x1xf32>
    %17 = math.rsqrt %16 : vector<8x1xf32>
    %18 = vector.broadcast %17 : vector<8x1xf32> to vector<8x32xf32>
    %19 = arith.mulf %9, %18 : vector<8x32xf32>
    %20 = vector.broadcast %0 : vector<1x32xf32> to vector<8x32xf32>
    %21 = arith.mulf %19, %20 : vector<8x32xf32>
    %22 = vector.broadcast %1 : vector<1x32xf32> to vector<8x32xf32>
    %23 = arith.addf %21, %22 : vector<8x32xf32>
    %24 = arith.truncf %23 : vector<8x32xf32> to vector<8x32xbf16>
    %c0_10 = arith.constant 0 : index
    %c0_11 = arith.constant 0 : index
    %25 = vector.load %arg10[%c0_10, %c0_11] : memref<32x64xbf16, #tpu.memory_space<vmem>>, vector<32x64xbf16>
    %cst_12 = arith.constant dense<0.000000e+00> : vector<8x64xf32>
    %26 = tpu.matmul %24, %25, %cst_12 {dimension_numbers = #tpu.dot_dimension_numbers<[1], [0], [0], [1], [0, 0, 1, 1], [], []>} : vector<8x32xbf16>, vector<32x64xbf16>, vector<8x64xf32> -> vector<8x64xf32>
    %27 = vector.extract_strided_slice %26 {offsets = [0, 0], sizes = [8, 32], strides = [1, 1]} : vector<8x64xf32> to vector<8x32xf32>
    %28 = arith.truncf %27 : vector<8x32xf32> to vector<8x32xbf16>
    %29 = vector.extract_strided_slice %26 {offsets = [0, 32], sizes = [8, 32], strides = [1, 1]} : vector<8x64xf32> to vector<8x32xf32>
    %30 = arith.truncf %29 : vector<8x32xf32> to vector<8x32xbf16>
    %c0_13 = arith.constant 0 : index
    %c0_14 = arith.constant 0 : index
    %c0_15 = arith.constant 0 : index
    %31 = vector.load %arg3[%c0_13, %c0_14, %c0_15] : memref<1x8x32xf32, #tpu.memory_space<vmem>>, vector<1x8x32xf32>
    %32 = vector.shape_cast %31 : vector<1x8x32xf32> to vector<8x32xf32>
    %cst_16 = arith.constant dense<0.000000e+00> : vector<8xf32>
    %33 = vector.multi_reduction <add>, %32, %cst_16 [1] : vector<8x32xf32> to vector<8xf32>
    %34 = vector.shape_cast %33 : vector<8xf32> to vector<8x1xf32>
    %cst_17 = arith.constant 3.200000e+01 : f32
    %35 = vector.broadcast %cst_17 : f32 to vector<8x1xf32>
    %36 = arith.divf %34, %35 : vector<8x1xf32>
    %37 = vector.broadcast %36 : vector<8x1xf32> to vector<8x32xf32>
    %38 = arith.subf %32, %37 : vector<8x32xf32>
    %39 = arith.mulf %38, %38 : vector<8x32xf32>
    %cst_18 = arith.constant dense<0.000000e+00> : vector<8xf32>
    %40 = vector.multi_reduction <add>, %39, %cst_18 [1] : vector<8x32xf32> to vector<8xf32>
    %41 = vector.shape_cast %40 : vector<8xf32> to vector<8x1xf32>
    %cst_19 = arith.constant 3.200000e+01 : f32
    %42 = vector.broadcast %cst_19 : f32 to vector<8x1xf32>
    %43 = arith.divf %41, %42 : vector<8x1xf32>
    %cst_20 = arith.constant 9.99999974E-6 : f32
    %44 = vector.broadcast %cst_20 : f32 to vector<8x1xf32>
    %45 = arith.addf %43, %44 : vector<8x1xf32>
    %46 = math.rsqrt %45 : vector<8x1xf32>
    %47 = vector.broadcast %46 : vector<8x1xf32> to vector<8x32xf32>
    %48 = arith.mulf %38, %47 : vector<8x32xf32>
    %49 = vector.broadcast %0 : vector<1x32xf32> to vector<8x32xf32>
    %50 = arith.mulf %48, %49 : vector<8x32xf32>
    %51 = vector.broadcast %1 : vector<1x32xf32> to vector<8x32xf32>
    %52 = arith.addf %50, %51 : vector<8x32xf32>
    %53 = arith.truncf %52 : vector<8x32xf32> to vector<8x32xbf16>
    %c0_21 = arith.constant 0 : index
    %c0_22 = arith.constant 0 : index
    %54 = vector.load %arg8[%c0_21, %c0_22] : memref<32x64xbf16, #tpu.memory_space<vmem>>, vector<32x64xbf16>
    %cst_23 = arith.constant dense<0.000000e+00> : vector<8x64xf32>
    %55 = tpu.matmul %53, %54, %cst_23 {dimension_numbers = #tpu.dot_dimension_numbers<[1], [0], [0], [1], [0, 0, 1, 1], [], []>} : vector<8x32xbf16>, vector<32x64xbf16>, vector<8x64xf32> -> vector<8x64xf32>
    %56 = vector.extract_strided_slice %55 {offsets = [0, 0], sizes = [8, 32], strides = [1, 1]} : vector<8x64xf32> to vector<8x32xf32>
    %57 = arith.truncf %56 : vector<8x32xf32> to vector<8x32xbf16>
    %58 = vector.extract_strided_slice %55 {offsets = [0, 32], sizes = [8, 32], strides = [1, 1]} : vector<8x64xf32> to vector<8x32xf32>
    %c0_24 = arith.constant 0 : index
    %c0_25 = arith.constant 0 : index
    %59 = vector.load %arg9[%c0_24, %c0_25] : memref<1x32xf32, #tpu.memory_space<vmem>>, vector<1x32xf32>
    %60 = vector.broadcast %59 : vector<1x32xf32> to vector<8x32xf32>
    %61 = arith.addf %58, %60 : vector<8x32xf32>
    %62 = arith.negf %61 : vector<8x32xf32>
    %63 = math.exp %62 : vector<8x32xf32>
    %cst_26 = arith.constant 1.000000e+00 : f32
    %64 = vector.broadcast %cst_26 : f32 to vector<8x32xf32>
    %65 = arith.addf %64, %63 : vector<8x32xf32>
    %66 = arith.divf %64, %65 : vector<8x32xf32>
    %c0_27 = arith.constant 0 : index
    %c0_28 = arith.constant 0 : index
    %c0_29 = arith.constant 0 : index
    %67 = vector.load %arg5[%c0_27, %c0_28, %c0_29] : memref<1x1x8xf32, #tpu.memory_space<vmem>>, vector<1x1x8xf32>
    %68 = vector.shape_cast %67 : vector<1x1x8xf32> to vector<1x8xf32>
    %cst_30 = arith.constant 0.000000e+00 : f32
    %69 = vector.broadcast %cst_30 : f32 to vector<1x8xf32>
    %70 = arith.cmpf oeq, %68, %69 : vector<1x8xf32>
    %cst_31 = arith.constant -1.000000e+30 : f32
    %cst_32 = arith.constant 0.000000e+00 : f32
    %71 = vector.broadcast %cst_31 : f32 to vector<1x8xf32>
    %72 = vector.broadcast %cst_32 : f32 to vector<1x8xf32>
    %73 = arith.select %70, %71, %72 : vector<1x8xi1>, vector<1x8xf32>
    %c0_33 = arith.constant 0 : index
    %c0_34 = arith.constant 0 : index
    %c0_35 = arith.constant 0 : index
    %c0_36 = arith.constant 0 : index
    %74 = vector.load %arg4[%c0_33, %c0_34, %c0_35, %c0_36] : memref<1x4x8x8xbf16, #tpu.memory_space<vmem>>, vector<1x4x8x8xbf16>
    %75 = vector.shape_cast %74 : vector<1x4x8x8xbf16> to vector<4x8x8xbf16>
    %76 = arith.extf %75 : vector<4x8x8xbf16> to vector<4x8x8xf32>
    %77 = vector.shape_cast %73 : vector<1x8xf32> to vector<1x1x8xf32>
    %78 = vector.broadcast %77 : vector<1x1x8xf32> to vector<4x8x8xf32>
    %79 = arith.addf %76, %78 : vector<4x8x8xf32>
    %80 = vector.extract_strided_slice %57 {offsets = [0, 0], sizes = [8, 8], strides = [1, 1]} : vector<8x32xbf16> to vector<8x8xbf16>
    %81 = vector.extract_strided_slice %28 {offsets = [0, 0], sizes = [8, 8], strides = [1, 1]} : vector<8x32xbf16> to vector<8x8xbf16>
    %82 = vector.extract_strided_slice %30 {offsets = [0, 0], sizes = [8, 8], strides = [1, 1]} : vector<8x32xbf16> to vector<8x8xbf16>
    %cst_37 = arith.constant dense<0.000000e+00> : vector<8x8xf32>
    %83 = tpu.matmul %80, %81, %cst_37 {dimension_numbers = #tpu.dot_dimension_numbers<[1], [1], [0], [0], [0, 0, 1, 0], [], []>} : vector<8x8xbf16>, vector<8x8xbf16>, vector<8x8xf32> -> vector<8x8xf32>
    %84 = vector.extract_strided_slice %79 {offsets = [0, 0, 0], sizes = [1, 8, 8], strides = [1, 1, 1]} : vector<4x8x8xf32> to vector<1x8x8xf32>
    %85 = vector.shape_cast %84 : vector<1x8x8xf32> to vector<8x8xf32>
    %86 = arith.addf %83, %85 : vector<8x8xf32>
    %cst_38 = arith.constant dense<0xFF800000> : vector<8xf32>
    %87 = vector.multi_reduction <maximumf>, %86, %cst_38 [1] : vector<8x8xf32> to vector<8xf32>
    %88 = vector.shape_cast %87 : vector<8xf32> to vector<8x1xf32>
    %89 = vector.broadcast %88 : vector<8x1xf32> to vector<8x8xf32>
    %90 = arith.subf %86, %89 : vector<8x8xf32>
    %91 = math.exp %90 : vector<8x8xf32>
    %cst_39 = arith.constant dense<0.000000e+00> : vector<8xf32>
    %92 = vector.multi_reduction <add>, %91, %cst_39 [1] : vector<8x8xf32> to vector<8xf32>
    %93 = vector.shape_cast %92 : vector<8xf32> to vector<8x1xf32>
    %94 = arith.truncf %91 : vector<8x8xf32> to vector<8x8xbf16>
    %cst_40 = arith.constant dense<0.000000e+00> : vector<8x8xf32>
    %95 = tpu.matmul %94, %82, %cst_40 {dimension_numbers = #tpu.dot_dimension_numbers<[1], [0], [0], [1], [0, 0, 1, 1], [], []>} : vector<8x8xbf16>, vector<8x8xbf16>, vector<8x8xf32> -> vector<8x8xf32>
    %96 = tpu.reciprocal %93 {approx = true} : vector<8x1xf32> -> vector<8x1xf32>
    %97 = vector.broadcast %96 : vector<8x1xf32> to vector<8x8xf32>
    %98 = arith.mulf %95, %97 : vector<8x8xf32>
    %c0_41 = arith.constant 0 : index
    %c0_42 = arith.constant 0 : index
    %99 = vector.load %arg14[%c0_41, %c0_42] : memref<8x32xf32, #tpu.memory_space<vmem>>, vector<8x8xf32>
    tpu.vector_store %arg14[%c0_41, %c0_42], %98 {strides = array<i32>} : memref<8x32xf32, #tpu.memory_space<vmem>>, vector<8x8xf32>,
    %100 = vector.extract_strided_slice %57 {offsets = [0, 8], sizes = [8, 8], strides = [1, 1]} : vector<8x32xbf16> to vector<8x8xbf16>
    %101 = vector.extract_strided_slice %28 {offsets = [0, 8], sizes = [8, 8], strides = [1, 1]} : vector<8x32xbf16> to vector<8x8xbf16>
    %102 = vector.extract_strided_slice %30 {offsets = [0, 8], sizes = [8, 8], strides = [1, 1]} : vector<8x32xbf16> to vector<8x8xbf16>
    %cst_43 = arith.constant dense<0.000000e+00> : vector<8x8xf32>
    %103 = tpu.matmul %100, %101, %cst_43 {dimension_numbers = #tpu.dot_dimension_numbers<[1], [1], [0], [0], [0, 0, 1, 0], [], []>} : vector<8x8xbf16>, vector<8x8xbf16>, vector<8x8xf32> -> vector<8x8xf32>
    %104 = vector.extract_strided_slice %79 {offsets = [1, 0, 0], sizes = [1, 8, 8], strides = [1, 1, 1]} : vector<4x8x8xf32> to vector<1x8x8xf32>
    %105 = vector.shape_cast %104 : vector<1x8x8xf32> to vector<8x8xf32>
    %106 = arith.addf %103, %105 : vector<8x8xf32>
    %cst_44 = arith.constant dense<0xFF800000> : vector<8xf32>
    %107 = vector.multi_reduction <maximumf>, %106, %cst_44 [1] : vector<8x8xf32> to vector<8xf32>
    %108 = vector.shape_cast %107 : vector<8xf32> to vector<8x1xf32>
    %109 = vector.broadcast %108 : vector<8x1xf32> to vector<8x8xf32>
    %110 = arith.subf %106, %109 : vector<8x8xf32>
    %111 = math.exp %110 : vector<8x8xf32>
    %cst_45 = arith.constant dense<0.000000e+00> : vector<8xf32>
    %112 = vector.multi_reduction <add>, %111, %cst_45 [1] : vector<8x8xf32> to vector<8xf32>
    %113 = vector.shape_cast %112 : vector<8xf32> to vector<8x1xf32>
    %114 = arith.truncf %111 : vector<8x8xf32> to vector<8x8xbf16>
    %cst_46 = arith.constant dense<0.000000e+00> : vector<8x8xf32>
    %115 = tpu.matmul %114, %102, %cst_46 {dimension_numbers = #tpu.dot_dimension_numbers<[1], [0], [0], [1], [0, 0, 1, 1], [], []>} : vector<8x8xbf16>, vector<8x8xbf16>, vector<8x8xf32> -> vector<8x8xf32>
    %116 = tpu.reciprocal %113 {approx = true} : vector<8x1xf32> -> vector<8x1xf32>
    %117 = vector.broadcast %116 : vector<8x1xf32> to vector<8x8xf32>
    %118 = arith.mulf %115, %117 : vector<8x8xf32>
    %c0_47 = arith.constant 0 : index
    %c8 = arith.constant 8 : index
    %119 = vector.load %arg14[%c0_47, %c8] : memref<8x32xf32, #tpu.memory_space<vmem>>, vector<8x8xf32>
    tpu.vector_store %arg14[%c0_47, %c8], %118 {strides = array<i32>} : memref<8x32xf32, #tpu.memory_space<vmem>>, vector<8x8xf32>,
    %120 = vector.extract_strided_slice %57 {offsets = [0, 16], sizes = [8, 8], strides = [1, 1]} : vector<8x32xbf16> to vector<8x8xbf16>
    %121 = vector.extract_strided_slice %28 {offsets = [0, 16], sizes = [8, 8], strides = [1, 1]} : vector<8x32xbf16> to vector<8x8xbf16>
    %122 = vector.extract_strided_slice %30 {offsets = [0, 16], sizes = [8, 8], strides = [1, 1]} : vector<8x32xbf16> to vector<8x8xbf16>
    %cst_48 = arith.constant dense<0.000000e+00> : vector<8x8xf32>
    %123 = tpu.matmul %120, %121, %cst_48 {dimension_numbers = #tpu.dot_dimension_numbers<[1], [1], [0], [0], [0, 0, 1, 0], [], []>} : vector<8x8xbf16>, vector<8x8xbf16>, vector<8x8xf32> -> vector<8x8xf32>
    %124 = vector.extract_strided_slice %79 {offsets = [2, 0, 0], sizes = [1, 8, 8], strides = [1, 1, 1]} : vector<4x8x8xf32> to vector<1x8x8xf32>
    %125 = vector.shape_cast %124 : vector<1x8x8xf32> to vector<8x8xf32>
    %126 = arith.addf %123, %125 : vector<8x8xf32>
    %cst_49 = arith.constant dense<0xFF800000> : vector<8xf32>
    %127 = vector.multi_reduction <maximumf>, %126, %cst_49 [1] : vector<8x8xf32> to vector<8xf32>
    %128 = vector.shape_cast %127 : vector<8xf32> to vector<8x1xf32>
    %129 = vector.broadcast %128 : vector<8x1xf32> to vector<8x8xf32>
    %130 = arith.subf %126, %129 : vector<8x8xf32>
    %131 = math.exp %130 : vector<8x8xf32>
    %cst_50 = arith.constant dense<0.000000e+00> : vector<8xf32>
    %132 = vector.multi_reduction <add>, %131, %cst_50 [1] : vector<8x8xf32> to vector<8xf32>
    %133 = vector.shape_cast %132 : vector<8xf32> to vector<8x1xf32>
    %134 = arith.truncf %131 : vector<8x8xf32> to vector<8x8xbf16>
    %cst_51 = arith.constant dense<0.000000e+00> : vector<8x8xf32>
    %135 = tpu.matmul %134, %122, %cst_51 {dimension_numbers = #tpu.dot_dimension_numbers<[1], [0], [0], [1], [0, 0, 1, 1], [], []>} : vector<8x8xbf16>, vector<8x8xbf16>, vector<8x8xf32> -> vector<8x8xf32>
    %136 = tpu.reciprocal %133 {approx = true} : vector<8x1xf32> -> vector<8x1xf32>
    %137 = vector.broadcast %136 : vector<8x1xf32> to vector<8x8xf32>
    %138 = arith.mulf %135, %137 : vector<8x8xf32>
    %c0_52 = arith.constant 0 : index
    %c16 = arith.constant 16 : index
    %139 = vector.load %arg14[%c0_52, %c16] : memref<8x32xf32, #tpu.memory_space<vmem>>, vector<8x8xf32>
    tpu.vector_store %arg14[%c0_52, %c16], %138 {strides = array<i32>} : memref<8x32xf32, #tpu.memory_space<vmem>>, vector<8x8xf32>,
    %140 = vector.extract_strided_slice %57 {offsets = [0, 24], sizes = [8, 8], strides = [1, 1]} : vector<8x32xbf16> to vector<8x8xbf16>
    %141 = vector.extract_strided_slice %28 {offsets = [0, 24], sizes = [8, 8], strides = [1, 1]} : vector<8x32xbf16> to vector<8x8xbf16>
    %142 = vector.extract_strided_slice %30 {offsets = [0, 24], sizes = [8, 8], strides = [1, 1]} : vector<8x32xbf16> to vector<8x8xbf16>
    %cst_53 = arith.constant dense<0.000000e+00> : vector<8x8xf32>
    %143 = tpu.matmul %140, %141, %cst_53 {dimension_numbers = #tpu.dot_dimension_numbers<[1], [1], [0], [0], [0, 0, 1, 0], [], []>} : vector<8x8xbf16>, vector<8x8xbf16>, vector<8x8xf32> -> vector<8x8xf32>
    %144 = vector.extract_strided_slice %79 {offsets = [3, 0, 0], sizes = [1, 8, 8], strides = [1, 1, 1]} : vector<4x8x8xf32> to vector<1x8x8xf32>
    %145 = vector.shape_cast %144 : vector<1x8x8xf32> to vector<8x8xf32>
    %146 = arith.addf %143, %145 : vector<8x8xf32>
    %cst_54 = arith.constant dense<0xFF800000> : vector<8xf32>
    %147 = vector.multi_reduction <maximumf>, %146, %cst_54 [1] : vector<8x8xf32> to vector<8xf32>
    %148 = vector.shape_cast %147 : vector<8xf32> to vector<8x1xf32>
    %149 = vector.broadcast %148 : vector<8x1xf32> to vector<8x8xf32>
    %150 = arith.subf %146, %149 : vector<8x8xf32>
    %151 = math.exp %150 : vector<8x8xf32>
    %cst_55 = arith.constant dense<0.000000e+00> : vector<8xf32>
    %152 = vector.multi_reduction <add>, %151, %cst_55 [1] : vector<8x8xf32> to vector<8xf32>
    %153 = vector.shape_cast %152 : vector<8xf32> to vector<8x1xf32>
    %154 = arith.truncf %151 : vector<8x8xf32> to vector<8x8xbf16>
    %cst_56 = arith.constant dense<0.000000e+00> : vector<8x8xf32>
    %155 = tpu.matmul %154, %142, %cst_56 {dimension_numbers = #tpu.dot_dimension_numbers<[1], [0], [0], [1], [0, 0, 1, 1], [], []>} : vector<8x8xbf16>, vector<8x8xbf16>, vector<8x8xf32> -> vector<8x8xf32>
    %156 = tpu.reciprocal %153 {approx = true} : vector<8x1xf32> -> vector<8x1xf32>
    %157 = vector.broadcast %156 : vector<8x1xf32> to vector<8x8xf32>
    %158 = arith.mulf %155, %157 : vector<8x8xf32>
    %c0_57 = arith.constant 0 : index
    %c24 = arith.constant 24 : index
    %159 = vector.load %arg14[%c0_57, %c24] : memref<8x32xf32, #tpu.memory_space<vmem>>, vector<8x8xf32>
    tpu.vector_store %arg14[%c0_57, %c24], %158 {strides = array<i32>} : memref<8x32xf32, #tpu.memory_space<vmem>>, vector<8x8xf32>,
    %c0_58 = arith.constant 0 : index
    %c0_59 = arith.constant 0 : index
    %160 = vector.load %arg14[%c0_58, %c0_59] : memref<8x32xf32, #tpu.memory_space<vmem>>, vector<8x32xf32>
    %161 = arith.mulf %66, %160 : vector<8x32xf32>
    %162 = arith.truncf %161 : vector<8x32xf32> to vector<8x32xbf16>
    %c0_60 = arith.constant 0 : index
    %c0_61 = arith.constant 0 : index
    %163 = vector.load %arg11[%c0_60, %c0_61] : memref<32x32xbf16, #tpu.memory_space<vmem>>, vector<32x32xbf16>
    %cst_62 = arith.constant dense<0.000000e+00> : vector<8x32xf32>
    %164 = tpu.matmul %162, %163, %cst_62 {dimension_numbers = #tpu.dot_dimension_numbers<[1], [0], [0], [1], [0, 0, 1, 1], [], []>} : vector<8x32xbf16>, vector<32x32xbf16>, vector<8x32xf32> -> vector<8x32xf32>
    %c0_63 = arith.constant 0 : index
    %c0_64 = arith.constant 0 : index
    %165 = vector.load %arg12[%c0_63, %c0_64] : memref<1x32xf32, #tpu.memory_space<vmem>>, vector<1x32xf32>
    %166 = vector.broadcast %165 : vector<1x32xf32> to vector<8x32xf32>
    %167 = arith.addf %164, %166 : vector<8x32xf32>
    %c0_65 = arith.constant 0 : index
    %c0_66 = arith.constant 0 : index
    %c0_67 = arith.constant 0 : index
    %168 = vector.load %arg13[%c0_65, %c0_66, %c0_67] : memref<1x8x32xf32, #tpu.memory_space<vmem>>, vector<1x8x32xf32>
    %169 = vector.shape_cast %168 : vector<1x8x32xf32> to vector<8x32xf32>
    %170 = vector.shape_cast %167 : vector<8x32xf32> to vector<1x8x32xf32>
    tpu.vector_store %arg13[%c0_65, %c0_66, %c0_67], %170 {strides = array<i32>} : memref<1x8x32xf32, #tpu.memory_space<vmem>>, vector<1x8x32xf32>,
    return
  }
  func.func @transform_0(%arg0: i32, %arg1: i32) -> (i32, i32, i32) {
    %c0_i32 = arith.constant 0 : i32
    %c0_i32_0 = arith.constant 0 : i32
    %c0_i32_1 = arith.constant 0 : i32
    return %arg0, %c0_i32, %c0_i32_0 : i32, i32, i32
  }
  func.func @transform_1(%arg0: i32, %arg1: i32) -> (i32, i32, i32) {
    %c0_i32 = arith.constant 0 : i32
    %c0_i32_0 = arith.constant 0 : i32
    return %arg0, %arg1, %c0_i32 : i32, i32, i32
  }
  func.func @transform_2(%arg0: i32, %arg1: i32) -> (i32, i32, i32, i32) {
    %c0_i32 = arith.constant 0 : i32
    %c0_i32_0 = arith.constant 0 : i32
    %c0_i32_1 = arith.constant 0 : i32
    return %arg0, %c0_i32, %arg1, %c0_i32_0 : i32, i32, i32, i32
  }
  func.func @transform_3(%arg0: i32, %arg1: i32) -> (i32, i32, i32) {
    %c0_i32 = arith.constant 0 : i32
    %c0_i32_0 = arith.constant 0 : i32
    %c0_i32_1 = arith.constant 0 : i32
    return %arg0, %c0_i32, %c0_i32_0 : i32, i32, i32
  }
  func.func @transform_4(%arg0: i32, %arg1: i32) -> (i32, i32) {
    %c0_i32 = arith.constant 0 : i32
    %c0_i32_0 = arith.constant 0 : i32
    %c0_i32_1 = arith.constant 0 : i32
    return %c0_i32, %c0_i32_0 : i32, i32
  }
  func.func @transform_5(%arg0: i32, %arg1: i32) -> (i32, i32) {
    %c0_i32 = arith.constant 0 : i32
    %c0_i32_0 = arith.constant 0 : i32
    %c0_i32_1 = arith.constant 0 : i32
    return %c0_i32, %c0_i32_0 : i32, i32
  }
  func.func @transform_6(%arg0: i32, %arg1: i32) -> (i32, i32) {
    %c0_i32 = arith.constant 0 : i32
    %c0_i32_0 = arith.constant 0 : i32
    %c0_i32_1 = arith.constant 0 : i32
    return %c0_i32, %c0_i32_0 : i32, i32
  }
  func.func @transform_7(%arg0: i32, %arg1: i32) -> (i32, i32) {
    %c0_i32 = arith.constant 0 : i32
    %c0_i32_0 = arith.constant 0 : i32
    %c0_i32_1 = arith.constant 0 : i32
    return %c0_i32, %c0_i32_0 : i32, i32
  }
  func.func @transform_8(%arg0: i32, %arg1: i32) -> (i32, i32) {
    %c0_i32 = arith.constant 0 : i32
    %c0_i32_0 = arith.constant 0 : i32
    %c0_i32_1 = arith.constant 0 : i32
    return %c0_i32, %c0_i32_0 : i32, i32
  }
  func.func @transform_9(%arg0: i32, %arg1: i32) -> (i32, i32) {
    %c0_i32 = arith.constant 0 : i32
    %c0_i32_0 = arith.constant 0 : i32
    %c0_i32_1 = arith.constant 0 : i32
    return %c0_i32, %c0_i32_0 : i32, i32
  }
  func.func @transform_10(%arg0: i32, %arg1: i32) -> (i32, i32) {
    %c0_i32 = arith.constant 0 : i32
    %c0_i32_0 = arith.constant 0 : i32
    %c0_i32_1 = arith.constant 0 : i32
    return %c0_i32, %c0_i32_0 : i32, i32
  }
  func.func @transform_11(%arg0: i32, %arg1: i32) -> (i32, i32, i32) {
    %c0_i32 = arith.constant 0 : i32
    %c0_i32_0 = arith.constant 0 : i32
    return %arg0, %arg1, %c0_i32 : i32, i32, i32
  }
}

</mosaic_0001>

<llo_original>
// kernel: tpu_custom_call.1
$region0: #{tpu_custom_call.1}
  #allocation0 [shape = 'u32[]', space=smem, size = 0x4, offset = 0x4, fixed_abs, tag = 'smem constant byte address 0x4 - core index']
  #allocation1 [shape = 'u32[144,128]{1,0:T(1,128)}', space=vmem, size = 0x12000, scoped, tag = 'internal scratch']
  #allocation2 [shape = 'f32[8,32]{1,0:T(8,128)}', space=vmem, size = 0x1000, scoped, tag = 'scratch operand']
  %s0 = inlined_call_operand.hbm [shape: f32[2,8,32], index: 0, kind: input, shape index: {}]
  %s1 = inlined_call_operand.hbm [shape: f32[2,8,32], index: 1, kind: input, shape index: {}]
  %s2 = inlined_call_operand.hbm [shape: bf16[2,4,8,8], index: 2, kind: input, shape index: {}]
  %s3 = inlined_call_operand.vmem [shape: f32[2,1,8], index: 3, kind: input, shape index: {}]
  %s4 = inlined_call_operand.hbm [shape: f32[1,32], index: 4, kind: input, shape index: {}]
  %s5 = inlined_call_operand.hbm [shape: f32[1,32], index: 5, kind: input, shape index: {}]
  %s6 = inlined_call_operand.vmem [shape: bf16[32,64], index: 6, kind: input, shape index: {}]
  %s7 = inlined_call_operand.hbm [shape: f32[1,32], index: 7, kind: input, shape index: {}]
  %s8 = inlined_call_operand.hbm [shape: bf16[32,64], index: 8, kind: input, shape index: {}]
  %s9 = inlined_call_operand.vmem [shape: bf16[32,32], index: 9, kind: input, shape index: {}]
  %s10 = inlined_call_operand.vmem [shape: f32[1,32], index: 10, kind: input, shape index: {}]
  %s11 = inlined_call_operand.hbm [shape: f32[2,8,32], index: 11, kind: output, shape index: {}]
  %s12 = sld [smem:[#allocation0]]
  $region105: #{tpu_custom_call.1} parent=0
    _
  %s14 = ssub.s32 1, %s12
  %s15 = scalar_select 0, %s14, %s12
  $region1: #{tpu_custom_call.1} parent=0
    #allocation3 [shape = 'u8[8192]{0}', space=vmem, size = 0x2000, scoped, tag = 'input window, operand 0']
    #allocation4 [shape = 's32[2]{0}', space=sflag, size = 0x8, scoped, tag = 'scoped memory for tpu_custom_call.1']
    #allocation5 [shape = 's32[2]{0}', space=sflag, size = 0x8, scoped, tag = 'scoped memory for tpu_custom_call.1']
    #allocation6 [shape = 'u8[8192]{0}', space=vmem, size = 0x2000, scoped, tag = 'input window, operand 1']
    #allocation7 [shape = 's32[2]{0}', space=sflag, size = 0x8, scoped, tag = 'scoped memory for tpu_custom_call.1']
    #allocation8 [shape = 'u8[16384]{0}', space=vmem, size = 0x4000, scoped, tag = 'input window, operand 2']
    #allocation9 [shape = 'u8[512]{0}', space=vmem, size = 0x400, scoped, tag = 'input window, operand 4, single buffered']
    #allocation10 [shape = 's32[1]{0}', space=sflag, size = 0x4, scoped, tag = 'scoped memory for tpu_custom_call.1']
    #allocation11 [shape = 'u8[512]{0}', space=vmem, size = 0x400, scoped, tag = 'input window, operand 5, single buffered']
    #allocation12 [shape = 'u8[512]{0}', space=vmem, size = 0x400, scoped, tag = 'input window, operand 7, single buffered']
    #allocation13 [shape = 's32[1]{0}', space=sflag, size = 0x4, scoped, tag = 'scoped memory for tpu_custom_call.1']
    #allocation14 [shape = 'u8[8192]{0}', space=vmem, size = 0x2000, scoped, tag = 'input window, operand 8, single buffered']
    #allocation15 [shape = 'u8[8192]{0}', space=vmem, size = 0x2000, scoped, tag = 'output window, operand 0']
    %16 = vsyncpa [#allocation4], 0
    %s17 = scalar_lea.sflag [#allocation4], 1
    %18 = vsyncpa %s17, 0
    %19 = vsyncpa [#allocation7], 0
    %s20 = scalar_lea.sflag [#allocation7], 1
    %21 = vsyncpa %s20, 0
    %22 = vsyncpa [#allocation10], 0
    %23 = vsyncpa [#allocation13], 0
    %24 = vsyncpa [#allocation5], 0
    %s25 = scalar_lea.sflag [#allocation5], 1
    %26 = vsyncpa %s25, 0
    loop: start=0, step=1, limit=4
    $region2: #{tpu_custom_call.1} parent=1 // loop_pre_header
      _
    $region3: #{tpu_custom_call.1} parent=1 // loop_header
      %s28 = sphi 0, %s32
      %p29 = scmp.ge.s32.totalorder %s28, 4
      %s35 = sphi 0, %s47
      %s36 = sphi 0, %s43
      %s37 = sphi 0, %s35
      %s38 = sphi 0, %s36
      %s39 = sphi 0, %s37
      %s40 = sphi 0, %s38
      %s50 = sphi 0, %s52
      %s53 = sphi 0, %s50
      %s54 = sphi 0, %s53
      %s70 = sphi 0, %s54
      %s78 = sphi 0, %s80
      %s81 = sphi 0, %s78
      %s82 = sphi 0, %s81
      %s98 = sphi 0, %s82
      %s106 = sphi 0, %s108
      %s109 = sphi 0, %s106
      %s110 = sphi 0, %s109
      %s126 = sphi 0, %s110
      %s132 = sphi 0, %s134
      %s135 = sphi 0, %s132
      %s136 = sphi 0, %s135
      %s152 = sphi 0, %s136
      %s156 = sphi 0, %s156
      %s158 = sphi 0, %s156
      %s159 = sphi 0, %s158
      %s173 = sphi 0, %s159
      %s177 = sphi 0, %s177
      %s179 = sphi 0, %s177
      %s180 = sphi 0, %s179
      %s194 = sphi 0, %s180
      %s198 = sphi 0, %s198
      %s200 = sphi 0, %s198
      %s201 = sphi 0, %s200
      %s215 = sphi 0, %s201
      %s219 = sphi 0, %s219
      %s221 = sphi 0, %s219
      %s222 = sphi 0, %s221
      %s236 = sphi 0, %s222
      %s240 = sphi 0, %s240
      %s242 = sphi 0, %s240
      %s243 = sphi 0, %s242
      %s257 = sphi 0, %s243
      %s261 = sphi 0, %s261
      %s263 = sphi 0, %s261
      %s264 = sphi 0, %s263
      %s278 = sphi 0, %s264
      %s282 = sphi 0, %s282
      %s284 = sphi 0, %s282
      %s285 = sphi 0, %s284
      %s299 = sphi 0, %s285
      %s307 = sphi 0, %s309
      %s310 = sphi 0, %s307
      %s311 = sphi 0, %s310
      %s327 = sphi 0, %s311
    $region4: #{tpu_custom_call.1} parent=1 // loop_header_branch
      %31 = sbr.rel (%p29) target = $region8
    $region5: #{tpu_custom_call.1} parent=1 // loop_body
      %s33 = ssub.s32 %s28, 1
      %s34 = ssub.s32 %s28, 2
      %s41 = sadd.s32 1, %s36
      %p42 = scmp.ge.s32.totalorder %s41, 1
      %s43 = scalar_select %p42, 0, %s41
      %s44 = sadd.s32 1, %s35
      %s45 = scalar_select %p42, %s44, %s35
      %p46 = scmp.ge.s32.totalorder %s45, 2
      %s47 = scalar_select %p46, 0, %s45
      %s48 = ssub.s32 %s35, %s47
      %p49 = scmp.eq.s32.totalorder %s48, 0
      %s51 = sadd.s32 %s50, 1
      %s52 = scalar_select %p49, %s50, %s51
      %p55 = pneg %p49
      %p56 = scmp.eq.s32.totalorder %s28, 1
      %p57 = por %p55, %p56
      %p58 = scmp.ne.s32.totalorder %s50, %s53
      %p59 = scmp.eq.s32.totalorder %s28, 0
      %p60 = por %p58, %p59
      %p61 = scmp.ne.s32.totalorder %s50, %s53
      %p62 = scmp.eq.s32.totalorder %s33, 1
      %p63 = por %p61, %p62
      %p64 = scmp.ne.s32.totalorder %s53, %s54
      %p65 = scmp.eq.s32.totalorder %s33, 0
      %p66 = por %p64, %p65
      %p67 = scmp.ne.s32.totalorder %s53, %s54
      %p68 = scmp.eq.s32.totalorder %s34, 1
      %p69 = por %p67, %p68
      %p71 = scmp.ne.s32.totalorder %s54, %s70
      %p72 = scmp.eq.s32.totalorder %s34, 0
      %p73 = por %p71, %p72
      %s74 = ssub.s32 %s35, %s47
      %s75 = ssub.s32 %s36, %s43
      %s76 = sor.u32 %s74, %s75
      %p77 = scmp.eq.s32.totalorder %s76, 0
      %s79 = sadd.s32 %s78, 1
      %s80 = scalar_select %p77, %s78, %s79
      %p83 = pneg %p77
      %p84 = scmp.eq.s32.totalorder %s28, 1
      %p85 = por %p83, %p84
      %p86 = scmp.ne.s32.totalorder %s78, %s81
      %p87 = scmp.eq.s32.totalorder %s28, 0
      %p88 = por %p86, %p87
      %p89 = scmp.ne.s32.totalorder %s78, %s81
      %p90 = scmp.eq.s32.totalorder %s33, 1
      %p91 = por %p89, %p90
      %p92 = scmp.ne.s32.totalorder %s81, %s82
      %p93 = scmp.eq.s32.totalorder %s33, 0
      %p94 = por %p92, %p93
      %p95 = scmp.ne.s32.totalorder %s81, %s82
      %p96 = scmp.eq.s32.totalorder %s34, 1
      %p97 = por %p95, %p96
      %p99 = scmp.ne.s32.totalorder %s82, %s98
      %p100 = scmp.eq.s32.totalorder %s34, 0
      %p101 = por %p99, %p100
      %s102 = ssub.s32 %s35, %s47
      %s103 = ssub.s32 %s36, %s43
      %s104 = sor.u32 %s102, %s103
      %p105 = scmp.eq.s32.totalorder %s104, 0
      %s107 = sadd.s32 %s106, 1
      %s108 = scalar_select %p105, %s106, %s107
      %p111 = pneg %p105
      %p112 = scmp.eq.s32.totalorder %s28, 1
      %p113 = por %p111, %p112
      %p114 = scmp.ne.s32.totalorder %s106, %s109
      %p115 = scmp.eq.s32.totalorder %s28, 0
      %p116 = por %p114, %p115
      %p117 = scmp.ne.s32.totalorder %s106, %s109
      %p118 = scmp.eq.s32.totalorder %s33, 1
      %p119 = por %p117, %p118
      %p120 = scmp.ne.s32.totalorder %s109, %s110
      %p121 = scmp.eq.s32.totalorder %s33, 0
      %p122 = por %p120, %p121
      %p123 = scmp.ne.s32.totalorder %s109, %s110
      %p124 = scmp.eq.s32.totalorder %s34, 1
      %p125 = por %p123, %p124
      %p127 = scmp.ne.s32.totalorder %s110, %s126
      %p128 = scmp.eq.s32.totalorder %s34, 0
      %p129 = por %p127, %p128
      %s130 = ssub.s32 %s35, %s47
      %p131 = scmp.eq.s32.totalorder %s130, 0
      %s133 = sadd.s32 %s132, 1
      %s134 = scalar_select %p131, %s132, %s133
      %p137 = pneg %p131
      %p138 = scmp.eq.s32.totalorder %s28, 1
      %p139 = por %p137, %p138
      %p140 = scmp.ne.s32.totalorder %s132, %s135
      %p141 = scmp.eq.s32.totalorder %s28, 0
      %p142 = por %p140, %p141
      %p143 = scmp.ne.s32.totalorder %s132, %s135
      %p144 = scmp.eq.s32.totalorder %s33, 1
      %p145 = por %p143, %p144
      %p146 = scmp.ne.s32.totalorder %s135, %s136
      %p147 = scmp.eq.s32.totalorder %s33, 0
      %p148 = por %p146, %p147
      %p149 = scmp.ne.s32.totalorder %s135, %s136
      %p150 = scmp.eq.s32.totalorder %s34, 1
      %p151 = por %p149, %p150
      %p153 = scmp.ne.s32.totalorder %s136, %s152
      %p154 = scmp.eq.s32.totalorder %s34, 0
      %p155 = por %p153, %p154
      %s157 = sadd.s32 %s156, 1
      %p160 = scmp.eq.s32.totalorder %s28, 1
      %p161 = scmp.ne.s32.totalorder %s156, %s158
      %p162 = scmp.eq.s32.totalorder %s28, 0
      %p163 = por %p161, %p162
      %p164 = scmp.ne.s32.totalorder %s156, %s158
      %p165 = scmp.eq.s32.totalorder %s33, 1
      %p166 = por %p164, %p165
      %p167 = scmp.ne.s32.totalorder %s158, %s159
      %p168 = scmp.eq.s32.totalorder %s33, 0
      %p169 = por %p167, %p168
      %p170 = scmp.ne.s32.totalorder %s158, %s159
      %p171 = scmp.eq.s32.totalorder %s34, 1
      %p172 = por %p170, %p171
      %p174 = scmp.ne.s32.totalorder %s159, %s173
      %p175 = scmp.eq.s32.totalorder %s34, 0
      %p176 = por %p174, %p175
      %s178 = sadd.s32 %s177, 1
      %p181 = scmp.eq.s32.totalorder %s28, 1
      %p182 = scmp.ne.s32.totalorder %s177, %s179
      %p183 = scmp.eq.s32.totalorder %s28, 0
      %p184 = por %p182, %p183
      %p185 = scmp.ne.s32.totalorder %s177, %s179
      %p186 = scmp.eq.s32.totalorder %s33, 1
      %p187 = por %p185, %p186
      %p188 = scmp.ne.s32.totalorder %s179, %s180
      %p189 = scmp.eq.s32.totalorder %s33, 0
      %p190 = por %p188, %p189
      %p191 = scmp.ne.s32.totalorder %s179, %s180
      %p192 = scmp.eq.s32.totalorder %s34, 1
      %p193 = por %p191, %p192
      %p195 = scmp.ne.s32.totalorder %s180, %s194
      %p196 = scmp.eq.s32.totalorder %s34, 0
      %p197 = por %p195, %p196
      %s199 = sadd.s32 %s198, 1
      %p202 = scmp.eq.s32.totalorder %s28, 1
      %p203 = scmp.ne.s32.totalorder %s198, %s200
      %p204 = scmp.eq.s32.totalorder %s28, 0
      %p205 = por %p203, %p204
      %p206 = scmp.ne.s32.totalorder %s198, %s200
      %p207 = scmp.eq.s32.totalorder %s33, 1
      %p208 = por %p206, %p207
      %p209 = scmp.ne.s32.totalorder %s200, %s201
      %p210 = scmp.eq.s32.totalorder %s33, 0
      %p211 = por %p209, %p210
      %p212 = scmp.ne.s32.totalorder %s200, %s201
      %p213 = scmp.eq.s32.totalorder %s34, 1
      %p214 = por %p212, %p213
      %p216 = scmp.ne.s32.totalorder %s201, %s215
      %p217 = scmp.eq.s32.totalorder %s34, 0
      %p218 = por %p216, %p217
      %s220 = sadd.s32 %s219, 1
      %p223 = scmp.eq.s32.totalorder %s28, 1
      %p224 = scmp.ne.s32.totalorder %s219, %s221
      %p225 = scmp.eq.s32.totalorder %s28, 0
      %p226 = por %p224, %p225
      %p227 = scmp.ne.s32.totalorder %s219, %s221
      %p228 = scmp.eq.s32.totalorder %s33, 1
      %p229 = por %p227, %p228
      %p230 = scmp.ne.s32.totalorder %s221, %s222
      %p231 = scmp.eq.s32.totalorder %s33, 0
      %p232 = por %p230, %p231
      %p233 = scmp.ne.s32.totalorder %s221, %s222
      %p234 = scmp.eq.s32.totalorder %s34, 1
      %p235 = por %p233, %p234
      %p237 = scmp.ne.s32.totalorder %s222, %s236
      %p238 = scmp.eq.s32.totalorder %s34, 0
      %p239 = por %p237, %p238
      %s241 = sadd.s32 %s240, 1
      %p244 = scmp.eq.s32.totalorder %s28, 1
      %p245 = scmp.ne.s32.totalorder %s240, %s242
      %p246 = scmp.eq.s32.totalorder %s28, 0
      %p247 = por %p245, %p246
      %p248 = scmp.ne.s32.totalorder %s240, %s242
      %p249 = scmp.eq.s32.totalorder %s33, 1
      %p250 = por %p248, %p249
      %p251 = scmp.ne.s32.totalorder %s242, %s243
      %p252 = scmp.eq.s32.totalorder %s33, 0
      %p253 = por %p251, %p252
      %p254 = scmp.ne.s32.totalorder %s242, %s243
      %p255 = scmp.eq.s32.totalorder %s34, 1
      %p256 = por %p254, %p255
      %p258 = scmp.ne.s32.totalorder %s243, %s257
      %p259 = scmp.eq.s32.totalorder %s34, 0
      %p260 = por %p258, %p259
      %s262 = sadd.s32 %s261, 1
      %p265 = scmp.eq.s32.totalorder %s28, 1
      %p266 = scmp.ne.s32.totalorder %s261, %s263
      %p267 = scmp.eq.s32.totalorder %s28, 0
      %p268 = por %p266, %p267
      %p269 = scmp.ne.s32.totalorder %s261, %s263
      %p270 = scmp.eq.s32.totalorder %s33, 1
      %p271 = por %p269, %p270
      %p272 = scmp.ne.s32.totalorder %s263, %s264
      %p273 = scmp.eq.s32.totalorder %s33, 0
      %p274 = por %p272, %p273
      %p275 = scmp.ne.s32.totalorder %s263, %s264
      %p276 = scmp.eq.s32.totalorder %s34, 1
      %p277 = por %p275, %p276
      %p279 = scmp.ne.s32.totalorder %s264, %s278
      %p280 = scmp.eq.s32.totalorder %s34, 0
      %p281 = por %p279, %p280
      %s283 = sadd.s32 %s282, 1
      %p286 = scmp.eq.s32.totalorder %s28, 1
      %p287 = scmp.ne.s32.totalorder %s282, %s284
      %p288 = scmp.eq.s32.totalorder %s28, 0
      %p289 = por %p287, %p288
      %p290 = scmp.ne.s32.totalorder %s282, %s284
      %p291 = scmp.eq.s32.totalorder %s33, 1
      %p292 = por %p290, %p291
      %p293 = scmp.ne.s32.totalorder %s284, %s285
      %p294 = scmp.eq.s32.totalorder %s33, 0
      %p295 = por %p293, %p294
      %p296 = scmp.ne.s32.totalorder %s284, %s285
      %p297 = scmp.eq.s32.totalorder %s34, 1
      %p298 = por %p296, %p297
      %p300 = scmp.ne.s32.totalorder %s285, %s299
      %p301 = scmp.eq.s32.totalorder %s34, 0
      %p302 = por %p300, %p301
      %s303 = ssub.s32 %s35, %s47
      %s304 = ssub.s32 %s36, %s43
      %s305 = sor.u32 %s303, %s304
      %p306 = scmp.eq.s32.totalorder %s305, 0
      %s308 = sadd.s32 %s307, 1
      %s309 = scalar_select %p306, %s307, %s308
      %p312 = pneg %p306
      %p313 = scmp.eq.s32.totalorder %s28, 1
      %p314 = por %p312, %p313
      %p315 = scmp.ne.s32.totalorder %s307, %s310
      %p316 = scmp.eq.s32.totalorder %s28, 0
      %p317 = por %p315, %p316
      %p318 = scmp.ne.s32.totalorder %s307, %s310
      %p319 = scmp.eq.s32.totalorder %s33, 1
      %p320 = por %p318, %p319
      %p321 = scmp.ne.s32.totalorder %s310, %s311
      %p322 = scmp.eq.s32.totalorder %s33, 0
      %p323 = por %p321, %p322
      %p324 = scmp.ne.s32.totalorder %s310, %s311
      %p325 = scmp.eq.s32.totalorder %s34, 1
      %p326 = por %p324, %p325
      %p328 = scmp.ne.s32.totalorder %s311, %s327
      %p329 = scmp.eq.s32.totalorder %s34, 0
      %p330 = por %p328, %p329
      %p331 = scmp.le.s32.totalorder 1, %s28
      %p332 = scmp.lt.s32.totalorder %s28, 3
      %p333 = pnand %p331, %p332
      %p334 = pneg %p333
      // Predicated region
      $region9: #{tpu_custom_call.1} parent=5 // pred_check
        _
      $region10: #{tpu_custom_call.1} parent=5 // pred_check_branch
        %336 = sbr.rel (%p333) target = $region12
      $region11: #{tpu_custom_call.1} parent=5 // pred_region
        %s337 = ssub.s32 %s28, 1
        // Predicated region
        $region13: #{tpu_custom_call.1} parent=11 // pred_check
          %p338 = pneg %p169
        $region14: #{tpu_custom_call.1} parent=11 // pred_check_branch
          %340 = sbr.rel (%p338) target = $region16
        $region15: #{tpu_custom_call.1} parent=11 // pred_region
          %s342 = ssub.s32 16, 16
          %343 = vsyncadd [#allocation10], %s342
          %s345 = sshll.u32 [#allocation9], 4
          %s346 = int_to_ptr.vmem [resolvable:$true] %s345
          %348 = dma.hbm_to_vmem [thread:$0]  %s4, 16, %s346, [#allocation10]
        $region16: #{tpu_custom_call.1} parent=11 // pred_fallthru
          _
        // Predicated region
        $region17: #{tpu_custom_call.1} parent=11 // pred_check
          %p349 = pneg %p190
        $region18: #{tpu_custom_call.1} parent=11 // pred_check_branch
          %351 = sbr.rel (%p349) target = $region20
        $region19: #{tpu_custom_call.1} parent=11 // pred_region
          %s353 = ssub.s32 16, 16
          %354 = vsyncadd [#allocation10], %s353
          %s356 = sshll.u32 [#allocation11], 4
          %s357 = int_to_ptr.vmem [resolvable:$true] %s356
          %359 = dma.hbm_to_vmem [thread:$0]  %s5, 16, %s357, [#allocation10]
        $region20: #{tpu_custom_call.1} parent=11 // pred_fallthru
          _
        // Predicated region
        $region21: #{tpu_custom_call.1} parent=11 // pred_check
          %p360 = pneg %p211
        $region22: #{tpu_custom_call.1} parent=11 // pred_check_branch
          %362 = sbr.rel (%p360) target = $region24
        $region23: #{tpu_custom_call.1} parent=11 // pred_region
          _
        $region24: #{tpu_custom_call.1} parent=11 // pred_fallthru
          _
        // Predicated region
        $region25: #{tpu_custom_call.1} parent=11 // pred_check
          %p363 = pneg %p232
        $region26: #{tpu_custom_call.1} parent=11 // pred_check_branch
          %365 = sbr.rel (%p363) target = $region28
        $region27: #{tpu_custom_call.1} parent=11 // pred_region
          %s367 = ssub.s32 16, 16
          %368 = vsyncadd [#allocation13], %s367
          %s370 = sshll.u32 [#allocation12], 4
          %s371 = int_to_ptr.vmem [resolvable:$true] %s370
          %373 = dma.hbm_to_vmem [thread:$0]  %s7, 16, %s371, [#allocation13]
        $region28: #{tpu_custom_call.1} parent=11 // pred_fallthru
          _
        // Predicated region
        $region29: #{tpu_custom_call.1} parent=11 // pred_check
          %p374 = pneg %p253
        $region30: #{tpu_custom_call.1} parent=11 // pred_check_branch
          %376 = sbr.rel (%p374) target = $region32
        $region31: #{tpu_custom_call.1} parent=11 // pred_region
          %s378 = ssub.s32 256, 256
          %379 = vsyncadd [#allocation13], %s378
          %s380 = sshll.u32 [#allocation14], 4
          %s381 = int_to_ptr.vmem [resolvable:$true] %s380
          %386 = dma.hbm_to_vmem [thread:$0]  %s8, 256, %s381, [#allocation13], 64, 64, 4
        $region32: #{tpu_custom_call.1} parent=11 // pred_fallthru
          _
        // Predicated region
        $region33: #{tpu_custom_call.1} parent=11 // pred_check
          %p387 = pneg %p274
        $region34: #{tpu_custom_call.1} parent=11 // pred_check_branch
          %389 = sbr.rel (%p387) target = $region36
        $region35: #{tpu_custom_call.1} parent=11 // pred_region
          _
        $region36: #{tpu_custom_call.1} parent=11 // pred_fallthru
          _
        // Predicated region
        $region37: #{tpu_custom_call.1} parent=11 // pred_check
          %p390 = pneg %p295
        $region38: #{tpu_custom_call.1} parent=11 // pred_check_branch
          %392 = sbr.rel (%p390) target = $region40
        $region39: #{tpu_custom_call.1} parent=11 // pred_region
          _
        $region40: #{tpu_custom_call.1} parent=11 // pred_fallthru
          _
      $region12: #{tpu_custom_call.1} parent=5 // pred_fallthru
        _
      %p393 = scmp.lt.s32.totalorder %s28, 2
      // Predicated region
      $region41: #{tpu_custom_call.1} parent=5 // pred_check
        %p394 = pneg %p393
      $region42: #{tpu_custom_call.1} parent=5 // pred_check_branch
        %396 = sbr.rel (%p394) target = $region44
      $region43: #{tpu_custom_call.1} parent=5 // pred_region
        // Predicated region
        $region45: #{tpu_custom_call.1} parent=43 // pred_check
          %p397 = pneg %p60
        $region46: #{tpu_custom_call.1} parent=43 // pred_check_branch
          %399 = sbr.rel (%p397) target = $region48
        $region47: #{tpu_custom_call.1} parent=43 // pred_region
          %s400 = sand.u32 %s50, 1
          %s401 = scalar_lea.sflag [#allocation4], %s400
          %s402 = sand.u32 %s50, 1
          %s403 = smul.addr %s402, 8
          %s404 = scalar_lea.vmem [#allocation3], %s403
          %s406 = ssub.s32 128, 128
          %407 = vsyncadd %s401, %s406
          %s408 = smul.addr %s35, 128
          %s409 = scalar_lea.hbm %s0, %s408
          %s411 = sshll.u32 %s404, 4
          %s412 = int_to_ptr.vmem [resolvable:$true] %s411
          %414 = dma.hbm_to_vmem [thread:$0]  %s409, 128, %s412, %s401
        $region48: #{tpu_custom_call.1} parent=43 // pred_fallthru
          _
        // Predicated region
        $region49: #{tpu_custom_call.1} parent=43 // pred_check
          %p415 = pneg %p88
        $region50: #{tpu_custom_call.1} parent=43 // pred_check_branch
          %417 = sbr.rel (%p415) target = $region52
        $region51: #{tpu_custom_call.1} parent=43 // pred_region
          %s418 = sand.u32 %s28, 1
          %s419 = scalar_lea.sflag [#allocation7], %s418
          %s420 = sand.u32 %s78, 1
          %s421 = smul.addr %s420, 8
          %s422 = scalar_lea.vmem [#allocation6], %s421
          %s424 = ssub.s32 128, 128
          %425 = vsyncadd %s419, %s424
          %s426 = sadd.s32 %s36, %s35
          %s427 = smul.addr %s426, 128
          %s428 = scalar_lea.hbm %s1, %s427
          %s430 = sshll.u32 %s422, 4
          %s431 = int_to_ptr.vmem [resolvable:$true] %s430
          %433 = dma.hbm_to_vmem [thread:$0]  %s428, 128, %s431, %s419
        $region52: #{tpu_custom_call.1} parent=43 // pred_fallthru
          _
        // Predicated region
        $region53: #{tpu_custom_call.1} parent=43 // pred_check
          %p434 = pneg %p116
        $region54: #{tpu_custom_call.1} parent=43 // pred_check_branch
          %436 = sbr.rel (%p434) target = $region56
        $region55: #{tpu_custom_call.1} parent=43 // pred_region
          %s437 = sand.u32 %s28, 1
          %s438 = scalar_lea.sflag [#allocation7], %s437
          %s439 = sand.u32 %s106, 1
          %s440 = smul.addr %s439, 16
          %s441 = scalar_lea.vmem [#allocation8], %s440
          %s443 = ssub.s32 256, 256
          %444 = vsyncadd %s438, %s443
          %s445 = smul.addr %s35, 4
          %s446 = sadd.s32 %s36, %s445
          %s447 = smul.addr %s446, 64
          %s448 = scalar_lea.hbm %s2, %s447
          %s449 = sshll.u32 %s441, 4
          %s450 = int_to_ptr.vmem [resolvable:$true] %s449
          %455 = dma.hbm_to_vmem [thread:$0]  %s448, 256, %s450, %s438, 64, 64, 4
        $region56: #{tpu_custom_call.1} parent=43 // pred_fallthru
          _
        // Predicated region
        $region57: #{tpu_custom_call.1} parent=43 // pred_check
          %p456 = pneg %p142
        $region58: #{tpu_custom_call.1} parent=43 // pred_check_branch
          %458 = sbr.rel (%p456) target = $region60
        $region59: #{tpu_custom_call.1} parent=43 // pred_region
          %p459 = scmp.lt.s32.totalorder %s35, 1
          %s460 = scalar_select %p459, %s35, 1
          %s461 = scalar_lea.vmem %s3, %s460
        $region60: #{tpu_custom_call.1} parent=43 // pred_fallthru
          _
      $region44: #{tpu_custom_call.1} parent=5 // pred_fallthru
        _
      %p462 = scmp.le.s32.totalorder 1, %s28
      %p463 = scmp.lt.s32.totalorder %s28, 3
      %p464 = pnand %p462, %p463
      %p465 = pneg %p464
      // Predicated region
      $region61: #{tpu_custom_call.1} parent=5 // pred_check
        _
      $region62: #{tpu_custom_call.1} parent=5 // pred_check_branch
        %467 = sbr.rel (%p464) target = $region64
      $region63: #{tpu_custom_call.1} parent=5 // pred_region
        %s468 = ssub.s32 %s28, 1
        %s469 = sand.u32 %s53, 1
        %s470 = scalar_lea.sflag [#allocation4], %s469
        %s471 = sand.u32 %s53, 1
        %s472 = smul.addr %s471, 8
        %s473 = scalar_lea.vmem [#allocation3], %s472
        // Predicated region
        $region65: #{tpu_custom_call.1} parent=63 // pred_check
          %p474 = pneg %p66
        $region66: #{tpu_custom_call.1} parent=63 // pred_check_branch
          %476 = sbr.rel (%p474) target = $region68
        $region67: #{tpu_custom_call.1} parent=63 // pred_region
          %477 = dma.done %s470, 128
        $region68: #{tpu_custom_call.1} parent=63 // pred_fallthru
          _
        %s478 = sand.u32 %s33, 1
        %s479 = scalar_lea.sflag [#allocation7], %s478
        %s480 = sand.u32 %s81, 1
        %s481 = smul.addr %s480, 8
        %s482 = scalar_lea.vmem [#allocation6], %s481
        // Predicated region
        $region69: #{tpu_custom_call.1} parent=63 // pred_check
          %p483 = pneg %p94
        $region70: #{tpu_custom_call.1} parent=63 // pred_check_branch
          %485 = sbr.rel (%p483) target = $region72
        $region71: #{tpu_custom_call.1} parent=63 // pred_region
          %486 = dma.done %s479, 128
        $region72: #{tpu_custom_call.1} parent=63 // pred_fallthru
          _
        %s487 = sand.u32 %s33, 1
        %s488 = scalar_lea.sflag [#allocation7], %s487
        %s489 = sand.u32 %s109, 1
        %s490 = smul.addr %s489, 16
        %s491 = scalar_lea.vmem [#allocation8], %s490
        // Predicated region
        $region73: #{tpu_custom_call.1} parent=63 // pred_check
          %p492 = pneg %p122
        $region74: #{tpu_custom_call.1} parent=63 // pred_check_branch
          %494 = sbr.rel (%p492) target = $region76
        $region75: #{tpu_custom_call.1} parent=63 // pred_region
          %495 = dma.done %s488, 256
        $region76: #{tpu_custom_call.1} parent=63 // pred_fallthru
          _
        // Predicated region
        $region77: #{tpu_custom_call.1} parent=63 // pred_check
          %p496 = pneg %p169
        $region78: #{tpu_custom_call.1} parent=63 // pred_check_branch
          %498 = sbr.rel (%p496) target = $region80
        $region79: #{tpu_custom_call.1} parent=63 // pred_region
          %499 = dma.done [#allocation10], 16
        $region80: #{tpu_custom_call.1} parent=63 // pred_fallthru
          _
        // Predicated region
        $region81: #{tpu_custom_call.1} parent=63 // pred_check
          %p500 = pneg %p190
        $region82: #{tpu_custom_call.1} parent=63 // pred_check_branch
          %502 = sbr.rel (%p500) target = $region84
        $region83: #{tpu_custom_call.1} parent=63 // pred_region
          %503 = dma.done [#allocation10], 16
        $region84: #{tpu_custom_call.1} parent=63 // pred_fallthru
          _
        // Predicated region
        $region85: #{tpu_custom_call.1} parent=63 // pred_check
          %p504 = pneg %p232
        $region86: #{tpu_custom_call.1} parent=63 // pred_check_branch
          %506 = sbr.rel (%p504) target = $region88
        $region87: #{tpu_custom_call.1} parent=63 // pred_region
          %507 = dma.done [#allocation13], 16
        $region88: #{tpu_custom_call.1} parent=63 // pred_fallthru
          _
        // Predicated region
        $region89: #{tpu_custom_call.1} parent=63 // pred_check
          %p508 = pneg %p253
        $region90: #{tpu_custom_call.1} parent=63 // pred_check_branch
          %510 = sbr.rel (%p508) target = $region92
        $region91: #{tpu_custom_call.1} parent=63 // pred_region
          %511 = dma.done [#allocation13], 256
        $region92: #{tpu_custom_call.1} parent=63 // pred_fallthru
          _
        %s512 = sand.u32 %s53, 1
        %s513 = scalar_lea.sflag [#allocation4], %s512
        %s514 = sand.u32 %s53, 1
        %s515 = smul.addr %s514, 8
        %s516 = scalar_lea.vmem [#allocation3], %s515
        %p517 = pneg %p66
        %p518 = pneg %p63
        %s519 = sand.u32 %s33, 1
        %s520 = scalar_lea.sflag [#allocation7], %s519
        %s521 = sand.u32 %s81, 1
        %s522 = smul.addr %s521, 8
        %s523 = scalar_lea.vmem [#allocation6], %s522
        %p524 = pneg %p94
        %p525 = pneg %p91
        %s526 = sand.u32 %s33, 1
        %s527 = scalar_lea.sflag [#allocation7], %s526
        %s528 = sand.u32 %s109, 1
        %s529 = smul.addr %s528, 16
        %s530 = scalar_lea.vmem [#allocation8], %s529
        %p531 = pneg %p122
        %p532 = pneg %p119
        %p533 = scmp.lt.s32.totalorder %s37, 1
        %s534 = scalar_select %p533, %s37, 1
        %s535 = scalar_lea.vmem %s3, %s534
        %p536 = pneg %p148
        %p537 = pneg %p145
        %p538 = pneg %p169
        %p539 = pneg %p166
        %p540 = pneg %p190
        %p541 = pneg %p187
        %p542 = pneg %p211
        %p543 = pneg %p208
        %p544 = pneg %p232
        %p545 = pneg %p229
        %p546 = pneg %p253
        %p547 = pneg %p250
        %p548 = pneg %p274
        %p549 = pneg %p271
        %p550 = pneg %p295
        %p551 = pneg %p292
        %p552 = pneg %p323
        %p553 = pneg %p320
        %s554 = sand.u32 %s310, 1
        %s555 = scalar_lea.sflag [#allocation5], %s554
        %s556 = sand.u32 %s310, 1
        %s557 = smul.addr %s556, 8
        %s558 = scalar_lea.vmem [#allocation15], %s557
        %p559 = scmp.lt.s32.totalorder %s37, 1
        %s560 = scalar_select %p559, %s37, 1
        %s561 = scalar_lea.vmem %s3, %s560
        %v563 = vld [vmem:[#allocation9] sm:$0x1]
        %v564 = vld [vmem:[#allocation11] sm:$0x1]
        %v565 = vld [vmem:[%s473] sm:$0xff]
        %vm566 = vcmask 261120
        %v567 = vsel %vm566, %v565, 0.0
        %568 = vadd.xlane.f32.xlu0 %v567
        %v569 = vpop.xlane.xlu0 %568
        %v570 = vrcp.pop 32.0
        %v571 = vmul.f32 %v569, %v570
        %v572 = vsub.f32 %v565, %v571
        %v573 = vmul.f32 %v572, %v572
        %v574 = vsel %vm566, %v573, 0.0
        %575 = vadd.xlane.f32.xlu0 %v574
        %v576 = vpop.xlane.xlu0 %575
        %v577 = vmul.f32 %v576, %v570
        %v578 = vadd.f32 %v577, 1e-05
        %v579 = vrsqrt.pop %v578
        %v580 = vmul.f32 %v572, %v579
        %v582 = vlaneseq
        %v583 = vshrl.u32 %v582, 7
        %v584 = vsub.s32 0, %v583
        %v585 = vrot.slane %v563, %v584
        %v587 = vmul.f32 %v580, %v585
        %v589 = vlaneseq
        %v590 = vshrl.u32 %v589, 7
        %v591 = vsub.s32 0, %v590
        %v592 = vrot.slane %v564, %v591
        %v594 = vadd.f32 %v587, %v592
        %v595 = vpack.c.bf16 %v594, %v594
        %v596 = vld [vmem:[#allocation14] sm:$0xf]
        %v597 = vld [vmem:[#allocation14 + $0x4] sm:$0xf]
        %v598 = vld [vmem:[#allocation14 + $0x8] sm:$0xf]
        %v599 = vld [vmem:[#allocation14 + $0xc] sm:$0xf]
        %v604 = vunpack.c.l.b16 %v596
        %v605 = vunpack.c.l.b16 %v597
        %v606 = vunpack.c.l.b16 %v598
        %v607 = vunpack.c.l.b16 %v599
        %v608 = vpack.c.b16 %v605, %v604
        %v609 = vpack.c.b16 %v607, %v606
        %v613 = vsel %vm566, %v595, 0
        %615 = vmatprep.subr.bf16.mxu0 0
        %616 = vmatpush1.bf16.msra.mxu0 %v608
        %617 = vmatprep.subr.bf16.mxu0 0
        %618 = vmatpush1.bf16.msra.mxu0 %v609
        %619 = vmatprep.subr.bf16.mxu0 0
        %620 = vmatpush1.bf16.msra.mxu0 0
        %621 = vmatprep.subr.bf16.mxu0 0
        %622 = vmatpush1.bf16.msra.mxu0 0
        %623 = vmatprep.subr.bf16.mxu0 0
        %624 = vmatpush1.bf16.msra.mxu0 0
        %625 = vmatprep.subr.bf16.mxu0 0
        %626 = vmatpush1.bf16.msra.mxu0 0
        %627 = vmatprep.subr.bf16.mxu0 0
        %628 = vmatpush1.bf16.msra.mxu0 0
        %629 = vmatprep.subr.bf16.mxu0 0
        %630 = vmatpush1.bf16.msra.mxu0 0
        %631 = vmatprep.subr.bf16.mxu0 0
        %632 = vmatpush1.bf16.msra.mxu0 0
        %633 = vmatprep.subr.bf16.mxu0 0
        %634 = vmatpush1.bf16.msra.mxu0 0
        %635 = vmatprep.subr.bf16.mxu0 0
        %636 = vmatpush1.bf16.msra.mxu0 0
        %637 = vmatprep.subr.bf16.mxu0 0
        %638 = vmatpush1.bf16.msra.mxu0 0
        %639 = vmatprep.subr.bf16.mxu0 0
        %640 = vmatpush1.bf16.msra.mxu0 0
        %641 = vmatprep.subr.bf16.mxu0 0
        %642 = vmatpush1.bf16.msra.mxu0 0
        %643 = vmatprep.subr.bf16.mxu0 0
        %644 = vmatpush1.bf16.msra.mxu0 0
        %645 = vmatprep.subr.bf16.mxu0 0
        %646 = vmatpush1.bf16.msra.mxu0 0
        %647 = vmatprep.mubr.bf16.mxu0 0
        %648 = vmatmul.mubr.bf16.gmra.mrb[0].mxu0 %v613
        %v649 = vpop.f32.mrb[0].mxu0
        %v650 = vadd.f32 0.0, %v649
        %v651 = vpop.f32.mrb[0].mxu0
        %v652 = vpop.f32.mrb[0].mxu0
        %v653 = vpop.f32.mrb[0].mxu0
        %654 = vdwg.mxu0
        %v655 = vpack.c.bf16 %v650, %v650
        %v656 = vld [vmem:[%s482] sm:$0xff]
        %v657 = vsel %vm566, %v656, 0.0
        %658 = vadd.xlane.f32.xlu0 %v657
        %v659 = vpop.xlane.xlu0 %658
        %v660 = vmul.f32 %v659, %v570
        %v661 = vsub.f32 %v656, %v660
        %v662 = vmul.f32 %v661, %v661
        %v663 = vsel %vm566, %v662, 0.0
        %664 = vadd.xlane.f32.xlu0 %v663
        %v665 = vpop.xlane.xlu0 %664
        %v666 = vmul.f32 %v665, %v570
        %v667 = vadd.f32 %v666, 1e-05
        %v668 = vrsqrt.pop %v667
        %v669 = vmul.f32 %v661, %v668
        %v670 = vmul.f32 %v669, %v585
        %v671 = vadd.f32 %v670, %v592
        %v672 = vpack.c.bf16 %v671, %v671
        %v673 = vld [vmem:[%s6] sm:$0xf]
        %v674 = vld [vmem:[%s6 + $0x4] sm:$0xf]
        %v675 = vld [vmem:[%s6 + $0x8] sm:$0xf]
        %v676 = vld [vmem:[%s6 + $0xc] sm:$0xf]
        %v681 = vunpack.c.l.b16 %v673
        %v682 = vunpack.c.l.b16 %v674
        %v683 = vunpack.c.l.b16 %v675
        %v684 = vunpack.c.l.b16 %v676
        %v685 = vpack.c.b16 %v682, %v681
        %v686 = vpack.c.b16 %v684, %v683
        %v690 = vsel %vm566, %v672, 0
        %692 = vmatprep.subr.bf16.mxu0 0
        %693 = vmatpush1.bf16.msra.mxu0 %v685
        %694 = vmatprep.subr.bf16.mxu0 0
        %695 = vmatpush1.bf16.msra.mxu0 %v686
        %696 = vmatprep.subr.bf16.mxu0 0
        %697 = vmatpush1.bf16.msra.mxu0 0
        %698 = vmatprep.subr.bf16.mxu0 0
        %699 = vmatpush1.bf16.msra.mxu0 0
        %700 = vmatprep.subr.bf16.mxu0 0
        %701 = vmatpush1.bf16.msra.mxu0 0
        %702 = vmatprep.subr.bf16.mxu0 0
        %703 = vmatpush1.bf16.msra.mxu0 0
        %704 = vmatprep.subr.bf16.mxu0 0
        %705 = vmatpush1.bf16.msra.mxu0 0
        %706 = vmatprep.subr.bf16.mxu0 0
        %707 = vmatpush1.bf16.msra.mxu0 0
        %708 = vmatprep.subr.bf16.mxu0 0
        %709 = vmatpush1.bf16.msra.mxu0 0
        %710 = vmatprep.subr.bf16.mxu0 0
        %711 = vmatpush1.bf16.msra.mxu0 0
        %712 = vmatprep.subr.bf16.mxu0 0
        %713 = vmatpush1.bf16.msra.mxu0 0
        %714 = vmatprep.subr.bf16.mxu0 0
        %715 = vmatpush1.bf16.msra.mxu0 0
        %716 = vmatprep.subr.bf16.mxu0 0
        %717 = vmatpush1.bf16.msra.mxu0 0
        %718 = vmatprep.subr.bf16.mxu0 0
        %719 = vmatpush1.bf16.msra.mxu0 0
        %720 = vmatprep.subr.bf16.mxu0 0
        %721 = vmatpush1.bf16.msra.mxu0 0
        %722 = vmatprep.subr.bf16.mxu0 0
        %723 = vmatpush1.bf16.msra.mxu0 0
        %724 = vmatprep.mubr.bf16.mxu0 0
        %725 = vmatmul.mubr.bf16.gmra.mrb[0].mxu0 %v690
        %v726 = vpop.f32.mrb[0].mxu0
        %v727 = vadd.f32 0.0, %v726
        %v728 = vpop.f32.mrb[0].mxu0
        %v729 = vpop.f32.mrb[0].mxu0
        %v730 = vpop.f32.mrb[0].mxu0
        %731 = vdwg.mxu0
        %v732 = vpack.c.bf16 %v727, %v727
        %v733 = vld [vmem:[#allocation12] sm:$0x1]
        %v735 = vlaneseq
        %v736 = vshrl.u32 %v735, 7
        %v737 = vsub.s32 0, %v736
        %v738 = vrot.slane %v733, %v737
        %739 = vrot.lane.b32.xlu0 %v738, 32
        %v740 = vpop.permute.xlu0 %739
        %v742 = vadd.f32 %v727, %v740
        %v743 = vxor.u32 %v742, 2147483648
        %v744 = vmul.f32 %v743, 1.442695
        %v745 = vpow.pop %v744
        %v746 = vadd.f32 %v745, 1.0
        %v747 = vrcp.pop %v746
        %v748 = vmul.f32 1.0, %v747
        %v749 = vld [vmem:[%s561] sm:$0x1]
        %vm750 = vcmp.eq.f32.partialorder %v749, 0.0
        %v751 = vsel %vm750, -1e+30, 0.0
        %v752 = vld [vmem:[%s491] sm:$0xf]
        %v753 = vld [vmem:[%s491 + $0x4] sm:$0xf]
        %v754 = vld [vmem:[%s491 + $0x8] sm:$0xf]
        %v755 = vld [vmem:[%s491 + $0xc] sm:$0xf]
        %v756 = vunpack.c.l.bf16 %v752
        %v757 = vunpack.c.l.bf16 %v753
        %v758 = vunpack.c.l.bf16 %v754
        %v759 = vunpack.c.l.bf16 %v755
        %v761 = vlaneseq
        %v762 = vshrl.u32 %v761, 7
        %v763 = vsub.s32 0, %v762
        %v764 = vrot.slane %v751, %v763
        %v766 = vadd.f32 %v756, %v764
        %v767 = vadd.f32 %v757, %v764
        %v768 = vadd.f32 %v758, %v764
        %v769 = vadd.f32 %v759, %v764
        %vm770 = vcmask 64512
        %v772 = vsel %vm770, %v732, 0
        %v775 = vsel %vm770, %v655, 0
        %777 = vmatprep.subr.bf16.mxu0 0
        %778 = vmatpush1.bf16.xpose.msra.mxu0 %v775
        %779 = vmatprep.subr.bf16.mxu0 0
        %780 = vmatpush1.bf16.xpose.msra.mxu0 0
        %781 = vmatprep.subr.bf16.mxu0 0
        %782 = vmatpush1.bf16.xpose.msra.mxu0 0
        %783 = vmatprep.subr.bf16.mxu0 0
        %784 = vmatpush1.bf16.xpose.msra.mxu0 0
        %785 = vmatprep.subr.bf16.mxu0 0
        %786 = vmatpush1.bf16.xpose.msra.mxu0 0
        %787 = vmatprep.subr.bf16.mxu0 0
        %788 = vmatpush1.bf16.xpose.msra.mxu0 0
        %789 = vmatprep.subr.bf16.mxu0 0
        %790 = vmatpush1.bf16.xpose.msra.mxu0 0
        %791 = vmatprep.subr.bf16.mxu0 0
        %792 = vmatpush1.bf16.xpose.msra.mxu0 0
        %793 = vmatprep.subr.bf16.mxu0 0
        %794 = vmatpush1.bf16.xpose.msra.mxu0 0
        %795 = vmatprep.subr.bf16.mxu0 0
        %796 = vmatpush1.bf16.xpose.msra.mxu0 0
        %797 = vmatprep.subr.bf16.mxu0 0
        %798 = vmatpush1.bf16.xpose.msra.mxu0 0
        %799 = vmatprep.subr.bf16.mxu0 0
        %800 = vmatpush1.bf16.xpose.msra.mxu0 0
        %801 = vmatprep.subr.bf16.mxu0 0
        %802 = vmatpush1.bf16.xpose.msra.mxu0 0
        %803 = vmatprep.subr.bf16.mxu0 0
        %804 = vmatpush1.bf16.xpose.msra.mxu0 0
        %805 = vmatprep.subr.bf16.mxu0 0
        %806 = vmatpush1.bf16.xpose.msra.mxu0 0
        %807 = vmatprep.subr.bf16.mxu0 0
        %808 = vmatpush1.bf16.xpose.msra.mxu0 0
        %809 = vmatprep.mubr.bf16.mxu0 0
        %810 = vmatmul.mubr.bf16.gmra.mrb[0].mxu0 %v772
        %v811 = vpop.f32.mrb[0].mxu0
        %v812 = vadd.f32 %v766, %v811
        %v813 = vpop.f32.mrb[0].mxu0
        %v814 = vpop.f32.mrb[0].mxu0
        %v815 = vpop.f32.mrb[0].mxu0
        %816 = vdwg.mxu0
        %v817 = vsel %vm770, %v812, -inf
        %818 = vmax.xlane.f32.xlu0 %v817
        %v819 = vpop.xlane.xlu0 %818
        %v820 = vsub.f32 %v812, %v819
        %v821 = vmul.f32 %v820, 1.442695
        %v822 = vpow.pop %v821
        %v823 = vsel %vm770, %v822, 0.0
        %824 = vadd.xlane.f32.xlu0 %v823
        %v825 = vpop.xlane.xlu0 %824
        %v826 = vpack.c.bf16 %v822, %v822
        %828 = vrot.lane.b32.xlu0 %v655, 96
        %v829 = vpop.permute.xlu0 %828
        %v831 = vsel %vm770, %v826, 0
        %vm833 = vcmask 1043456
        %v835 = vsel %vm833, %v829, 0
        %837 = vmatprep.subr.bf16.mxu0 0
        %838 = vmatpush1.bf16.msra.mxu0 %v835
        %839 = vmatprep.subr.bf16.mxu0 0
        %840 = vmatpush1.bf16.msra.mxu0 0
        %841 = vmatprep.subr.bf16.mxu0 0
        %842 = vmatpush1.bf16.msra.mxu0 0
        %843 = vmatprep.subr.bf16.mxu0 0
        %844 = vmatpush1.bf16.msra.mxu0 0
        %845 = vmatprep.subr.bf16.mxu0 0
        %846 = vmatpush1.bf16.msra.mxu0 0
        %847 = vmatprep.subr.bf16.mxu0 0
        %848 = vmatpush1.bf16.msra.mxu0 0
        %849 = vmatprep.subr.bf16.mxu0 0
        %850 = vmatpush1.bf16.msra.mxu0 0
        %851 = vmatprep.subr.bf16.mxu0 0
        %852 = vmatpush1.bf16.msra.mxu0 0
        %853 = vmatprep.subr.bf16.mxu0 0
        %854 = vmatpush1.bf16.msra.mxu0 0
        %855 = vmatprep.subr.bf16.mxu0 0
        %856 = vmatpush1.bf16.msra.mxu0 0
        %857 = vmatprep.subr.bf16.mxu0 0
        %858 = vmatpush1.bf16.msra.mxu0 0
        %859 = vmatprep.subr.bf16.mxu0 0
        %860 = vmatpush1.bf16.msra.mxu0 0
        %861 = vmatprep.subr.bf16.mxu0 0
        %862 = vmatpush1.bf16.msra.mxu0 0
        %863 = vmatprep.subr.bf16.mxu0 0
        %864 = vmatpush1.bf16.msra.mxu0 0
        %865 = vmatprep.subr.bf16.mxu0 0
        %866 = vmatpush1.bf16.msra.mxu0 0
        %867 = vmatprep.subr.bf16.mxu0 0
        %868 = vmatpush1.bf16.msra.mxu0 0
        %869 = vmatprep.mubr.bf16.mxu0 0
        %870 = vmatmul.mubr.bf16.gmra.mrb[0].mxu0 %v831
        %v871 = vpop.f32.mrb[0].mxu0
        %v872 = vadd.f32 0.0, %v871
        %v873 = vpop.f32.mrb[0].mxu0
        %v874 = vpop.f32.mrb[0].mxu0
        %v875 = vpop.f32.mrb[0].mxu0
        %876 = vdwg.mxu0
        %v877 = vrcp.pop %v825
        %v878 = vmul.f32 %v872, %v877
        %879 = vst.msk [vmem:[#allocation2] sm:$0xff] %vm770, %v878
        %881 = vrot.lane.b32.xlu0 %v732, 120
        %v882 = vpop.permute.xlu0 %881
        %883 = vrot.lane.b32.xlu0 %v655, 120
        %v884 = vpop.permute.xlu0 %883
        %v886 = vsel %vm770, %v882, 0
        %v889 = vsel %vm770, %v884, 0
        %891 = vmatprep.subr.bf16.mxu0 0
        %892 = vmatpush1.bf16.xpose.msra.mxu0 %v889
        %893 = vmatprep.subr.bf16.mxu0 0
        %894 = vmatpush1.bf16.xpose.msra.mxu0 0
        %895 = vmatprep.subr.bf16.mxu0 0
        %896 = vmatpush1.bf16.xpose.msra.mxu0 0
        %897 = vmatprep.subr.bf16.mxu0 0
        %898 = vmatpush1.bf16.xpose.msra.mxu0 0
        %899 = vmatprep.subr.bf16.mxu0 0
        %900 = vmatpush1.bf16.xpose.msra.mxu0 0
        %901 = vmatprep.subr.bf16.mxu0 0
        %902 = vmatpush1.bf16.xpose.msra.mxu0 0
        %903 = vmatprep.subr.bf16.mxu0 0
        %904 = vmatpush1.bf16.xpose.msra.mxu0 0
        %905 = vmatprep.subr.bf16.mxu0 0
        %906 = vmatpush1.bf16.xpose.msra.mxu0 0
        %907 = vmatprep.subr.bf16.mxu0 0
        %908 = vmatpush1.bf16.xpose.msra.mxu0 0
        %909 = vmatprep.subr.bf16.mxu0 0
        %910 = vmatpush1.bf16.xpose.msra.mxu0 0
        %911 = vmatprep.subr.bf16.mxu0 0
        %912 = vmatpush1.bf16.xpose.msra.mxu0 0
        %913 = vmatprep.subr.bf16.mxu0 0
        %914 = vmatpush1.bf16.xpose.msra.mxu0 0
        %915 = vmatprep.subr.bf16.mxu0 0
        %916 = vmatpush1.bf16.xpose.msra.mxu0 0
        %917 = vmatprep.subr.bf16.mxu0 0
        %918 = vmatpush1.bf16.xpose.msra.mxu0 0
        %919 = vmatprep.subr.bf16.mxu0 0
        %920 = vmatpush1.bf16.xpose.msra.mxu0 0
        %921 = vmatprep.subr.bf16.mxu0 0
        %922 = vmatpush1.bf16.xpose.msra.mxu0 0
        %923 = vmatprep.mubr.bf16.mxu0 0
        %924 = vmatmul.mubr.bf16.gmra.mrb[0].mxu0 %v886
        %v925 = vpop.f32.mrb[0].mxu0
        %v926 = vadd.f32 %v767, %v925
        %v927 = vpop.f32.mrb[0].mxu0
        %v928 = vpop.f32.mrb[0].mxu0
        %v929 = vpop.f32.mrb[0].mxu0
        %930 = vdwg.mxu0
        %v931 = vsel %vm770, %v926, -inf
        %932 = vmax.xlane.f32.xlu0 %v931
        %v933 = vpop.xlane.xlu0 %932
        %v934 = vsub.f32 %v926, %v933
        %v935 = vmul.f32 %v934, 1.442695
        %v936 = vpow.pop %v935
        %v937 = vsel %vm770, %v936, 0.0
        %938 = vadd.xlane.f32.xlu0 %v937
        %v939 = vpop.xlane.xlu0 %938
        %v940 = vpack.c.bf16 %v936, %v936
        %941 = vrot.lane.b32.xlu0 %v655, 88
        %v942 = vpop.permute.xlu0 %941
        %v944 = vsel %vm770, %v940, 0
        %v947 = vsel %vm833, %v942, 0
        %949 = vmatprep.subr.bf16.mxu0 0
        %950 = vmatpush1.bf16.msra.mxu0 %v947
        %951 = vmatprep.subr.bf16.mxu0 0
        %952 = vmatpush1.bf16.msra.mxu0 0
        %953 = vmatprep.subr.bf16.mxu0 0
        %954 = vmatpush1.bf16.msra.mxu0 0
        %955 = vmatprep.subr.bf16.mxu0 0
        %956 = vmatpush1.bf16.msra.mxu0 0
        %957 = vmatprep.subr.bf16.mxu0 0
        %958 = vmatpush1.bf16.msra.mxu0 0
        %959 = vmatprep.subr.bf16.mxu0 0
        %960 = vmatpush1.bf16.msra.mxu0 0
        %961 = vmatprep.subr.bf16.mxu0 0
        %962 = vmatpush1.bf16.msra.mxu0 0
        %963 = vmatprep.subr.bf16.mxu0 0
        %964 = vmatpush1.bf16.msra.mxu0 0
        %965 = vmatprep.subr.bf16.mxu0 0
        %966 = vmatpush1.bf16.msra.mxu0 0
        %967 = vmatprep.subr.bf16.mxu0 0
        %968 = vmatpush1.bf16.msra.mxu0 0
        %969 = vmatprep.subr.bf16.mxu0 0
        %970 = vmatpush1.bf16.msra.mxu0 0
        %971 = vmatprep.subr.bf16.mxu0 0
        %972 = vmatpush1.bf16.msra.mxu0 0
        %973 = vmatprep.subr.bf16.mxu0 0
        %974 = vmatpush1.bf16.msra.mxu0 0
        %975 = vmatprep.subr.bf16.mxu0 0
        %976 = vmatpush1.bf16.msra.mxu0 0
        %977 = vmatprep.subr.bf16.mxu0 0
        %978 = vmatpush1.bf16.msra.mxu0 0
        %979 = vmatprep.subr.bf16.mxu0 0
        %980 = vmatpush1.bf16.msra.mxu0 0
        %981 = vmatprep.mubr.bf16.mxu0 0
        %982 = vmatmul.mubr.bf16.gmra.mrb[0].mxu0 %v944
        %v983 = vpop.f32.mrb[0].mxu0
        %v984 = vadd.f32 0.0, %v983
        %v985 = vpop.f32.mrb[0].mxu0
        %v986 = vpop.f32.mrb[0].mxu0
        %v987 = vpop.f32.mrb[0].mxu0
        %988 = vdwg.mxu0
        %v989 = vrcp.pop %v939
        %v990 = vmul.f32 %v984, %v989
        %992 = vrot.lane.b32.xlu0 %v990, 8
        %v993 = vpop.permute.xlu0 %992
        %vm995 = vcmask 130112
        %996 = vst.msk [vmem:[#allocation2] sm:$0xff] %vm995, %v993
        %997 = vrot.lane.b32.xlu0 %v732, 112
        %v998 = vpop.permute.xlu0 %997
        %999 = vrot.lane.b32.xlu0 %v655, 112
        %v1000 = vpop.permute.xlu0 %999
        %v1002 = vsel %vm770, %v998, 0
        %v1005 = vsel %vm770, %v1000, 0
        %1007 = vmatprep.subr.bf16.mxu0 0
        %1008 = vmatpush1.bf16.xpose.msra.mxu0 %v1005
        %1009 = vmatprep.subr.bf16.mxu0 0
        %1010 = vmatpush1.bf16.xpose.msra.mxu0 0
        %1011 = vmatprep.subr.bf16.mxu0 0
        %1012 = vmatpush1.bf16.xpose.msra.mxu0 0
        %1013 = vmatprep.subr.bf16.mxu0 0
        %1014 = vmatpush1.bf16.xpose.msra.mxu0 0
        %1015 = vmatprep.subr.bf16.mxu0 0
        %1016 = vmatpush1.bf16.xpose.msra.mxu0 0
        %1017 = vmatprep.subr.bf16.mxu0 0
        %1018 = vmatpush1.bf16.xpose.msra.mxu0 0
        %1019 = vmatprep.subr.bf16.mxu0 0
        %1020 = vmatpush1.bf16.xpose.msra.mxu0 0
        %1021 = vmatprep.subr.bf16.mxu0 0
        %1022 = vmatpush1.bf16.xpose.msra.mxu0 0
        %1023 = vmatprep.subr.bf16.mxu0 0
        %1024 = vmatpush1.bf16.xpose.msra.mxu0 0
        %1025 = vmatprep.subr.bf16.mxu0 0
        %1026 = vmatpush1.bf16.xpose.msra.mxu0 0
        %1027 = vmatprep.subr.bf16.mxu0 0
        %1028 = vmatpush1.bf16.xpose.msra.mxu0 0
        %1029 = vmatprep.subr.bf16.mxu0 0
        %1030 = vmatpush1.bf16.xpose.msra.mxu0 0
        %1031 = vmatprep.subr.bf16.mxu0 0
        %1032 = vmatpush1.bf16.xpose.msra.mxu0 0
        %1033 = vmatprep.subr.bf16.mxu0 0
        %1034 = vmatpush1.bf16.xpose.msra.mxu0 0
        %1035 = vmatprep.subr.bf16.mxu0 0
        %1036 = vmatpush1.bf16.xpose.msra.mxu0 0
        %1037 = vmatprep.subr.bf16.mxu0 0
        %1038 = vmatpush1.bf16.xpose.msra.mxu0 0
        %1039 = vmatprep.mubr.bf16.mxu0 0
        %1040 = vmatmul.mubr.bf16.gmra.mrb[0].mxu0 %v1002
        %v1041 = vpop.f32.mrb[0].mxu0
        %v1042 = vadd.f32 %v768, %v1041
        %v1043 = vpop.f32.mrb[0].mxu0
        %v1044 = vpop.f32.mrb[0].mxu0
        %v1045 = vpop.f32.mrb[0].mxu0
        %1046 = vdwg.mxu0
        %v1047 = vsel %vm770, %v1042, -inf
        %1048 = vmax.xlane.f32.xlu0 %v1047
        %v1049 = vpop.xlane.xlu0 %1048
        %v1050 = vsub.f32 %v1042, %v1049
        %v1051 = vmul.f32 %v1050, 1.442695
        %v1052 = vpow.pop %v1051
        %v1053 = vsel %vm770, %v1052, 0.0
        %1054 = vadd.xlane.f32.xlu0 %v1053
        %v1055 = vpop.xlane.xlu0 %1054
        %v1056 = vpack.c.bf16 %v1052, %v1052
        %1057 = vrot.lane.b32.xlu0 %v655, 80
        %v1058 = vpop.permute.xlu0 %1057
        %v1060 = vsel %vm770, %v1056, 0
        %v1063 = vsel %vm833, %v1058, 0
        %1065 = vmatprep.subr.bf16.mxu0 0
        %1066 = vmatpush1.bf16.msra.mxu0 %v1063
        %1067 = vmatprep.subr.bf16.mxu0 0
        %1068 = vmatpush1.bf16.msra.mxu0 0
        %1069 = vmatprep.subr.bf16.mxu0 0
        %1070 = vmatpush1.bf16.msra.mxu0 0
        %1071 = vmatprep.subr.bf16.mxu0 0
        %1072 = vmatpush1.bf16.msra.mxu0 0
        %1073 = vmatprep.subr.bf16.mxu0 0
        %1074 = vmatpush1.bf16.msra.mxu0 0
        %1075 = vmatprep.subr.bf16.mxu0 0
        %1076 = vmatpush1.bf16.msra.mxu0 0
        %1077 = vmatprep.subr.bf16.mxu0 0
        %1078 = vmatpush1.bf16.msra.mxu0 0
        %1079 = vmatprep.subr.bf16.mxu0 0
        %1080 = vmatpush1.bf16.msra.mxu0 0
        %1081 = vmatprep.subr.bf16.mxu0 0
        %1082 = vmatpush1.bf16.msra.mxu0 0
        %1083 = vmatprep.subr.bf16.mxu0 0
        %1084 = vmatpush1.bf16.msra.mxu0 0
        %1085 = vmatprep.subr.bf16.mxu0 0
        %1086 = vmatpush1.bf16.msra.mxu0 0
        %1087 = vmatprep.subr.bf16.mxu0 0
        %1088 = vmatpush1.bf16.msra.mxu0 0
        %1089 = vmatprep.subr.bf16.mxu0 0
        %1090 = vmatpush1.bf16.msra.mxu0 0
        %1091 = vmatprep.subr.bf16.mxu0 0
        %1092 = vmatpush1.bf16.msra.mxu0 0
        %1093 = vmatprep.subr.bf16.mxu0 0
        %1094 = vmatpush1.bf16.msra.mxu0 0
        %1095 = vmatprep.subr.bf16.mxu0 0
        %1096 = vmatpush1.bf16.msra.mxu0 0
        %1097 = vmatprep.mubr.bf16.mxu0 0
        %1098 = vmatmul.mubr.bf16.gmra.mrb[0].mxu0 %v1060
        %v1099 = vpop.f32.mrb[0].mxu0
        %v1100 = vadd.f32 0.0, %v1099
        %v1101 = vpop.f32.mrb[0].mxu0
        %v1102 = vpop.f32.mrb[0].mxu0
        %v1103 = vpop.f32.mrb[0].mxu0
        %1104 = vdwg.mxu0
        %v1105 = vrcp.pop %v1055
        %v1106 = vmul.f32 %v1100, %v1105
        %1108 = vrot.lane.b32.xlu0 %v1106, 16
        %v1109 = vpop.permute.xlu0 %1108
        %vm1111 = vcmask 195712
        %1112 = vst.msk [vmem:[#allocation2] sm:$0xff] %vm1111, %v1109
        %1113 = vrot.lane.b32.xlu0 %v732, 104
        %v1114 = vpop.permute.xlu0 %1113
        %1115 = vrot.lane.b32.xlu0 %v655, 104
        %v1116 = vpop.permute.xlu0 %1115
        %v1118 = vsel %vm770, %v1114, 0
        %v1121 = vsel %vm770, %v1116, 0
        %1123 = vmatprep.subr.bf16.mxu0 0
        %1124 = vmatpush1.bf16.xpose.msra.mxu0 %v1121
        %1125 = vmatprep.subr.bf16.mxu0 0
        %1126 = vmatpush1.bf16.xpose.msra.mxu0 0
        %1127 = vmatprep.subr.bf16.mxu0 0
        %1128 = vmatpush1.bf16.xpose.msra.mxu0 0
        %1129 = vmatprep.subr.bf16.mxu0 0
        %1130 = vmatpush1.bf16.xpose.msra.mxu0 0
        %1131 = vmatprep.subr.bf16.mxu0 0
        %1132 = vmatpush1.bf16.xpose.msra.mxu0 0
        %1133 = vmatprep.subr.bf16.mxu0 0
        %1134 = vmatpush1.bf16.xpose.msra.mxu0 0
        %1135 = vmatprep.subr.bf16.mxu0 0
        %1136 = vmatpush1.bf16.xpose.msra.mxu0 0
        %1137 = vmatprep.subr.bf16.mxu0 0
        %1138 = vmatpush1.bf16.xpose.msra.mxu0 0
        %1139 = vmatprep.subr.bf16.mxu0 0
        %1140 = vmatpush1.bf16.xpose.msra.mxu0 0
        %1141 = vmatprep.subr.bf16.mxu0 0
        %1142 = vmatpush1.bf16.xpose.msra.mxu0 0
        %1143 = vmatprep.subr.bf16.mxu0 0
        %1144 = vmatpush1.bf16.xpose.msra.mxu0 0
        %1145 = vmatprep.subr.bf16.mxu0 0
        %1146 = vmatpush1.bf16.xpose.msra.mxu0 0
        %1147 = vmatprep.subr.bf16.mxu0 0
        %1148 = vmatpush1.bf16.xpose.msra.mxu0 0
        %1149 = vmatprep.subr.bf16.mxu0 0
        %1150 = vmatpush1.bf16.xpose.msra.mxu0 0
        %1151 = vmatprep.subr.bf16.mxu0 0
        %1152 = vmatpush1.bf16.xpose.msra.mxu0 0
        %1153 = vmatprep.subr.bf16.mxu0 0
        %1154 = vmatpush1.bf16.xpose.msra.mxu0 0
        %1155 = vmatprep.mubr.bf16.mxu0 0
        %1156 = vmatmul.mubr.bf16.gmra.mrb[0].mxu0 %v1118
        %v1157 = vpop.f32.mrb[0].mxu0
        %v1158 = vadd.f32 %v769, %v1157
        %v1159 = vpop.f32.mrb[0].mxu0
        %v1160 = vpop.f32.mrb[0].mxu0
        %v1161 = vpop.f32.mrb[0].mxu0
        %1162 = vdwg.mxu0
        %v1163 = vsel %vm770, %v1158, -inf
        %1164 = vmax.xlane.f32.xlu0 %v1163
        %v1165 = vpop.xlane.xlu0 %1164
        %v1166 = vsub.f32 %v1158, %v1165
        %v1167 = vmul.f32 %v1166, 1.442695
        %v1168 = vpow.pop %v1167
        %v1169 = vsel %vm770, %v1168, 0.0
        %1170 = vadd.xlane.f32.xlu0 %v1169
        %v1171 = vpop.xlane.xlu0 %1170
        %v1172 = vpack.c.bf16 %v1168, %v1168
        %1173 = vrot.lane.b32.xlu0 %v655, 72
        %v1174 = vpop.permute.xlu0 %1173
        %v1176 = vsel %vm770, %v1172, 0
        %v1179 = vsel %vm833, %v1174, 0
        %1181 = vmatprep.subr.bf16.mxu0 0
        %1182 = vmatpush1.bf16.msra.mxu0 %v1179
        %1183 = vmatprep.subr.bf16.mxu0 0
        %1184 = vmatpush1.bf16.msra.mxu0 0
        %1185 = vmatprep.subr.bf16.mxu0 0
        %1186 = vmatpush1.bf16.msra.mxu0 0
        %1187 = vmatprep.subr.bf16.mxu0 0
        %1188 = vmatpush1.bf16.msra.mxu0 0
        %1189 = vmatprep.subr.bf16.mxu0 0
        %1190 = vmatpush1.bf16.msra.mxu0 0
        %1191 = vmatprep.subr.bf16.mxu0 0
        %1192 = vmatpush1.bf16.msra.mxu0 0
        %1193 = vmatprep.subr.bf16.mxu0 0
        %1194 = vmatpush1.bf16.msra.mxu0 0
        %1195 = vmatprep.subr.bf16.mxu0 0
        %1196 = vmatpush1.bf16.msra.mxu0 0
        %1197 = vmatprep.subr.bf16.mxu0 0
        %1198 = vmatpush1.bf16.msra.mxu0 0
        %1199 = vmatprep.subr.bf16.mxu0 0
        %1200 = vmatpush1.bf16.msra.mxu0 0
        %1201 = vmatprep.subr.bf16.mxu0 0
        %1202 = vmatpush1.bf16.msra.mxu0 0
        %1203 = vmatprep.subr.bf16.mxu0 0
        %1204 = vmatpush1.bf16.msra.mxu0 0
        %1205 = vmatprep.subr.bf16.mxu0 0
        %1206 = vmatpush1.bf16.msra.mxu0 0
        %1207 = vmatprep.subr.bf16.mxu0 0
        %1208 = vmatpush1.bf16.msra.mxu0 0
        %1209 = vmatprep.subr.bf16.mxu0 0
        %1210 = vmatpush1.bf16.msra.mxu0 0
        %1211 = vmatprep.subr.bf16.mxu0 0
        %1212 = vmatpush1.bf16.msra.mxu0 0
        %1213 = vmatprep.mubr.bf16.mxu0 0
        %1214 = vmatmul.mubr.bf16.gmra.mrb[0].mxu0 %v1176
        %v1215 = vpop.f32.mrb[0].mxu0
        %v1216 = vadd.f32 0.0, %v1215
        %v1217 = vpop.f32.mrb[0].mxu0
        %v1218 = vpop.f32.mrb[0].mxu0
        %v1219 = vpop.f32.mrb[0].mxu0
        %1220 = vdwg.mxu0
        %v1221 = vrcp.pop %v1171
        %v1222 = vmul.f32 %v1216, %v1221
        %1224 = vrot.lane.b32.xlu0 %v1222, 24
        %v1225 = vpop.permute.xlu0 %1224
        %vm1227 = vcmask 261312
        %1228 = vst.msk [vmem:[#allocation2] sm:$0xff] %vm1227, %v1225
        %v1229 = vld [vmem:[#allocation2] sm:$0xff]
        %1231 = vrot.lane.b32.xlu0 %v1229, 32
        %v1232 = vpop.permute.xlu0 %1231
        %v1234 = vmul.f32 %v748, %v1232
        %v1235 = vpack.c.bf16 %v1234, %v1234
        %v1236 = vld [vmem:[%s9] sm:$0xf]
        %v1237 = vld [vmem:[%s9 + $0x4] sm:$0xf]
        %v1238 = vld [vmem:[%s9 + $0x8] sm:$0xf]
        %v1239 = vld [vmem:[%s9 + $0xc] sm:$0xf]
        %v1240 = vld [vmem:[%s10] sm:$0x1]
        %v1242 = vlaneseq
        %v1243 = vshrl.u32 %v1242, 7
        %v1244 = vsub.s32 0, %v1243
        %v1245 = vrot.slane %v1240, %v1244
        %1248 = vrot.lane.b32.xlu0 %v1235, 96
        %v1249 = vpop.permute.xlu0 %1248
        %v1254 = vunpack.c.l.b16 %v1236
        %v1255 = vunpack.c.l.b16 %v1237
        %v1256 = vunpack.c.l.b16 %v1238
        %v1257 = vunpack.c.l.b16 %v1239
        %v1258 = vpack.c.b16 %v1255, %v1254
        %v1259 = vpack.c.b16 %v1257, %v1256
        %v1263 = vsel %vm566, %v1249, 0
        %1265 = vmatprep.subr.bf16.mxu0 0
        %1266 = vmatpush1.bf16.msra.mxu0 %v1258
        %1267 = vmatprep.subr.bf16.mxu0 0
        %1268 = vmatpush1.bf16.msra.mxu0 %v1259
        %1269 = vmatprep.subr.bf16.mxu0 0
        %1270 = vmatpush1.bf16.msra.mxu0 0
        %1271 = vmatprep.subr.bf16.mxu0 0
        %1272 = vmatpush1.bf16.msra.mxu0 0
        %1273 = vmatprep.subr.bf16.mxu0 0
        %1274 = vmatpush1.bf16.msra.mxu0 0
        %1275 = vmatprep.subr.bf16.mxu0 0
        %1276 = vmatpush1.bf16.msra.mxu0 0
        %1277 = vmatprep.subr.bf16.mxu0 0
        %1278 = vmatpush1.bf16.msra.mxu0 0
        %1279 = vmatprep.subr.bf16.mxu0 0
        %1280 = vmatpush1.bf16.msra.mxu0 0
        %1281 = vmatprep.subr.bf16.mxu0 0
        %1282 = vmatpush1.bf16.msra.mxu0 0
        %1283 = vmatprep.subr.bf16.mxu0 0
        %1284 = vmatpush1.bf16.msra.mxu0 0
        %1285 = vmatprep.subr.bf16.mxu0 0
        %1286 = vmatpush1.bf16.msra.mxu0 0
        %1287 = vmatprep.subr.bf16.mxu0 0
        %1288 = vmatpush1.bf16.msra.mxu0 0
        %1289 = vmatprep.subr.bf16.mxu0 0
        %1290 = vmatpush1.bf16.msra.mxu0 0
        %1291 = vmatprep.subr.bf16.mxu0 0
        %1292 = vmatpush1.bf16.msra.mxu0 0
        %1293 = vmatprep.subr.bf16.mxu0 0
        %1294 = vmatpush1.bf16.msra.mxu0 0
        %1295 = vmatprep.subr.bf16.mxu0 0
        %1296 = vmatpush1.bf16.msra.mxu0 0
        %1297 = vmatprep.mubr.bf16.mxu0 0
        %1298 = vmatmul.mubr.bf16.gmra.mrb[0].mxu0 %v1263
        %v1299 = vpop.f32.mrb[0].mxu0
        %v1300 = vadd.f32 %v1245, %v1299
        %v1301 = vpop.f32.mrb[0].mxu0
        %v1302 = vpop.f32.mrb[0].mxu0
        %v1303 = vpop.f32.mrb[0].mxu0
        %1304 = vdwg.mxu0
        %1305 = vst.msk [vmem:[%s558] sm:$0xff] %vm566, %v1300
        %s1306 = sand.u32 %s310, 1
        %s1307 = scalar_lea.sflag [#allocation5], %s1306
        %s1308 = sand.u32 %s310, 1
        %s1309 = smul.addr %s1308, 8
        %s1310 = scalar_lea.vmem [#allocation15], %s1309
        // Predicated region
        $region93: #{tpu_custom_call.1} parent=63 // pred_check
          %p1311 = pneg %p320
        $region94: #{tpu_custom_call.1} parent=63 // pred_check_branch
          %1313 = sbr.rel (%p1311) target = $region96
        $region95: #{tpu_custom_call.1} parent=63 // pred_region
          %s1315 = ssub.s32 128, 128
          %1316 = vsyncadd %s1307, %s1315
          %s1317 = sadd.s32 %s38, %s37
          %s1318 = smul.addr %s1317, 128
          %s1319 = scalar_lea.hbm %s11, %s1318
          %s1321 = sshll.u32 %s1310, 4
          %s1322 = int_to_ptr.vmem [resolvable:$true] %s1321
          %1324 = dma.vmem_to_hbm [thread:$0]  %s1322, 128, %s1319, %s1307
        $region96: #{tpu_custom_call.1} parent=63 // pred_fallthru
          _
      $region64: #{tpu_custom_call.1} parent=5 // pred_fallthru
        _
      %p1325 = scmp.le.s32.totalorder 2, %s28
      // Predicated region
      $region97: #{tpu_custom_call.1} parent=5 // pred_check
        %p1326 = pneg %p1325
      $region98: #{tpu_custom_call.1} parent=5 // pred_check_branch
        %1328 = sbr.rel (%p1326) target = $region100
      $region99: #{tpu_custom_call.1} parent=5 // pred_region
        %s1329 = ssub.s32 %s28, 2
        // Predicated region
        $region101: #{tpu_custom_call.1} parent=99 // pred_check
          %p1330 = pneg %p326
        $region102: #{tpu_custom_call.1} parent=99 // pred_check_branch
          %1332 = sbr.rel (%p1330) target = $region104
        $region103: #{tpu_custom_call.1} parent=99 // pred_region
          %s1333 = sand.u32 %s311, 1
          %s1334 = scalar_lea.sflag [#allocation5], %s1333
          %s1335 = sand.u32 %s311, 1
          %s1336 = smul.addr %s1335, 8
          %s1337 = scalar_lea.vmem [#allocation15], %s1336
          %1338 = dma.done %s1334, 128
        $region104: #{tpu_custom_call.1} parent=99 // pred_fallthru
          _
      $region100: #{tpu_custom_call.1} parent=5 // pred_fallthru
        _
    $region6: #{tpu_custom_call.1} parent=1 // loop_footer
      %s32 = sadd.s32 1, %s28
    $region7: #{tpu_custom_call.1} parent=1 // loop_footer_branch
      %27 = sbr.rel target = $region3
    $region8: #{tpu_custom_call.1} parent=1 // loop_exit
      _
    %1339 = vsyncpa [#allocation4], 1
    %s1340 = scalar_lea.sflag [#allocation4], 1
    %1341 = vsyncpa %s1340, 1
    %1342 = vsyncpa [#allocation7], 1
    %s1343 = scalar_lea.sflag [#allocation7], 1
    %1344 = vsyncpa %s1343, 1
    %1345 = vsyncpa [#allocation10], 1
    %1346 = vsyncpa [#allocation13], 1
    %1347 = vsyncpa [#allocation5], 1
    %s1348 = scalar_lea.sflag [#allocation5], 1
    %1349 = vsyncpa %s1348, 1

</llo_original>
